<compile_context>
chip_gen: v7x
topology: tpu7x:2x2x1
jax: 0.10.0
libtpu: 0.0.40
codegen_flags: <defaults>
</compile_context>

<pallas_src>
import functools

import jax
import jax.numpy as jnp
from jax.experimental import pallas as pl
from jax.experimental.pallas import tpu as pltpu

EPS = 1e-5
LANE = 128


def _round_up(x, m):
    return (x + m - 1) // m * m


def _choose_row_tile(npool):
    # Largest power-of-two tile (16..512) that divides npool and leaves >= 2 grid
    # steps (so the pipeline actually overlaps DMA and compute); fallback pads.
    for t in (512, 256, 128, 64, 32, 16):
        if npool % t == 0 and npool // t >= 2:
            return t
    return min(512, _round_up(npool, 16))


def _stats_kernel(patches_ref, w_ref, ssum_ref, ssq_ref, *, pp):
    """Phase 1: per-tap conv matmul, accumulate per-channel sum / sum-of-squares."""
    @pl.when(pl.program_id(0) == 0)
    def _():
        ssum_ref[...] = jnp.zeros_like(ssum_ref)
        ssq_ref[...] = jnp.zeros_like(ssq_ref)

    w = w_ref[...]
    s = jnp.zeros(ssum_ref.shape, jnp.float32)
    s2 = jnp.zeros(ssq_ref.shape, jnp.float32)
    for j in range(pp):  # static unroll over the p*p pooling taps
        c = jnp.dot(patches_ref[j], w, preferred_element_type=jnp.float32)
        s = s + jnp.sum(c, axis=0, keepdims=True)
        s2 = s2 + jnp.sum(c * c, axis=0, keepdims=True)
    ssum_ref[...] += s
    ssq_ref[...] += s2


def _apply_kernel(patches_ref, w_ref, scale_ref, shift_ref, out_ref, *, pp):
    """Phase 2: recompute conv, fused BN scale/shift + ReLU, max over pooling taps."""
    w = w_ref[...]
    scale = scale_ref[...]
    shift = shift_ref[...]
    acc = None
    for j in range(pp):  # static unroll over the p*p pooling taps
        c = jnp.dot(patches_ref[j], w, preferred_element_type=jnp.float32)
        y = jnp.maximum(c * scale + shift, 0.0)
        acc = y if acc is None else jnp.maximum(acc, y)
    out_ref[...] = acc


@functools.partial(jax.jit, static_argnames=("pooling_size", "matmul_dtype"))
def patch_conv_layer(x_nchw, conv_w, conv_b, gamma, beta, pooling_size,
                     matmul_dtype=jnp.bfloat16):
    """x_nchw: [B, Cin, H, W] float32.  Returns [B, Cout, H//p, W//p] float32."""
    del conv_b  # training-mode BN subtracts the batch mean -> constant bias is dead
    B, Cin, H, W = x_nchw.shape
    Cout = conv_w.shape[0]
    p = pooling_size
    assert H % p == 0 and W % p == 0, "MaxPool remainder not supported (as before)"
    Hp, Wp = H // p, W // p
    pp = p * p
    K = 9 * Cin
    Npool = B * Hp * Wp
    Cp = _round_up(Cout, LANE)            # lane-dense output / MXU columns

    TN = _choose_row_tile(Npool)          # pooled rows per grid step (multiple of 16)
    Npool_pad = _round_up(Npool, TN)
    nT = Npool_pad // TN

    # ---- glue: im2col (NHWC), rows split as (pooling-tap, pooled-position) ----
    x_nhwc = jnp.transpose(x_nchw, (0, 2, 3, 1))
    xp = jnp.pad(x_nhwc, ((0, 0), (1, 1), (1, 1), (0, 0)))
    cols = [xp[:, kh:kh + H, kw:kw + W, :] for kh in range(3) for kw in range(3)]
    patches = jnp.concatenate(cols, axis=-1)                    # [B,H,W,9*Cin]
    patches = patches.reshape(B, Hp, p, Wp, p, K)
    patches = jnp.transpose(patches, (2, 4, 0, 1, 3, 5)).reshape(pp, Npool, K)
    if Npool_pad != Npool:
        # zero rows: contribute 0 to conv, hence 0 to sum/sumsq (no bias) -> stats ok
        patches = jnp.pad(patches, ((0, 0), (0, Npool_pad - Npool), (0, 0)))
    patches = patches.astype(matmul_dtype)

    # ---- glue: weights [Cout,Cin,3,3] -> [K, Cp] (feat order (kh,kw,ci)), pad Cout ----
    w2 = jnp.transpose(conv_w, (2, 3, 1, 0)).reshape(K, Cout)
    w2 = jnp.pad(w2, ((0, 0), (0, Cp - Cout))).astype(matmul_dtype)
    g2 = jnp.pad(gamma, (0, Cp - Cout)).reshape(1, Cp).astype(jnp.float32)
    be2 = jnp.pad(beta, (0, Cp - Cout)).reshape(1, Cp).astype(jnp.float32)

    itemsize = jnp.dtype(matmul_dtype).itemsize
    flops = 2 * pp * Npool_pad * K * Cp
    patch_bytes = pp * Npool_pad * K * itemsize
    w_bytes = K * Cp * itemsize

    # ---- phase 1: batch statistics (M tiled, accumulator outputs, "arbitrary") ----
    ssum, ssq = pl.pallas_call(
        functools.partial(_stats_kernel, pp=pp),
        out_shape=(jax.ShapeDtypeStruct((1, Cp), jnp.float32),
                   jax.ShapeDtypeStruct((1, Cp), jnp.float32)),
        grid_spec=pl.GridSpec(
            grid=(nT,),
            in_specs=[pl.BlockSpec((pp, TN, K), lambda t: (0, t, 0)),
                      pl.BlockSpec((K, Cp), lambda t: (0, 0))],
            out_specs=(pl.BlockSpec((1, Cp), lambda t: (0, 0)),
                       pl.BlockSpec((1, Cp), lambda t: (0, 0)))),
        compiler_params=pltpu.CompilerParams(dimension_semantics=("arbitrary",)),
        cost_estimate=pl.CostEstimate(flops=flops, transcendentals=0,
                                      bytes_accessed=patch_bytes + w_bytes + 2 * Cp * 4),
    )(patches, w2)

    # ---- fold BN into one scale/shift (tiny per-channel math, f32) ----
    count = jnp.float32(pp * Npool)                 # true element count per channel
    mean = ssum / count
    var = jnp.maximum(ssq / count - mean * mean, 0.0)   # biased, one-pass
    scale = g2 * jax.lax.rsqrt(var + EPS)
    shift = be2 - mean * scale

    # ---- phase 2: normalize + ReLU + max-pool (M tiled, fully "parallel") ----
    out_flat = pl.pallas_call(
        functools.partial(_apply_kernel, pp=pp),
        out_shape=jax.ShapeDtypeStruct((Npool_pad, Cp), jnp.float32),
        grid_spec=pl.GridSpec(
            grid=(nT,),
            in_specs=[pl.BlockSpec((pp, TN, K), lambda t: (0, t, 0)),
                      pl.BlockSpec((K, Cp), lambda t: (0, 0)),
                      pl.BlockSpec((1, Cp), lambda t: (0, 0)),
                      pl.BlockSpec((1, Cp), lambda t: (0, 0))],
            out_specs=pl.BlockSpec((TN, Cp), lambda t: (t, 0))),
        compiler_params=pltpu.CompilerParams(dimension_semantics=("parallel",)),
        cost_estimate=pl.CostEstimate(flops=flops, transcendentals=0,
                                      bytes_accessed=patch_bytes + w_bytes + Npool_pad * Cp * 4),
    )(patches, w2, scale, shift)

    # ---- glue: drop channel/row padding, back to PyTorch NCHW ----
    out = out_flat[:Npool, :Cout].reshape(B, Hp, Wp, Cout)
    return jnp.transpose(out, (0, 3, 1, 2))


def _reference(x, conv_w, conv_b, gamma, beta, p):
    """Pure-JAX reference matching the PyTorch forward (training-mode BN)."""
    conv = jax.lax.conv_general_dilated(
        x, conv_w, window_strides=(1, 1), padding="SAME",
        dimension_numbers=("NCHW", "OIHW", "NCHW"))
    conv = conv + conv_b[None, :, None, None]
    mean = jnp.mean(conv, axis=(0, 2, 3), keepdims=True)
    var = jnp.mean(jnp.square(conv - mean), axis=(0, 2, 3), keepdims=True)
    y = (conv - mean) * jax.lax.rsqrt(var + EPS)
    y = y * gamma[None, :, None, None] + beta[None, :, None, None]
    y = jnp.maximum(y, 0.0)
    B, C, H, W = y.shape
    y = y.reshape(B, C, H // p, p, W // p, p)
    return jnp.max(y, axis=(3, 5))


if __name__ == "__main__":
    B, Cin, H, W = 2, 4, 16, 16
    Cout, pooling_size = 8, 2

    key = jax.random.PRNGKey(0)
    k1, k2, k3, k4, k5 = jax.random.split(key, 5)
    conv_w = 0.1 * jax.random.normal(k1, (Cout, Cin, 3, 3), dtype=jnp.float32)
    conv_b = 0.1 * jax.random.normal(k2, (Cout,), dtype=jnp.float32)
    gamma = 1.0 + 0.1 * jax.random.normal(k3, (Cout,), dtype=jnp.float32)
    beta = 0.1 * jax.random.normal(k4, (Cout,), dtype=jnp.float32)
    x = jax.random.normal(k5, (B, Cin, H, W), dtype=jnp.float32)

    ref = _reference(x, conv_w, conv_b, gamma, beta, pooling_size)

    # f32 MXU operands: parity with the module's f32 math at tight tolerance.
    out_f32 = patch_conv_layer(x, conv_w, conv_b, gamma, beta,
                               pooling_size=pooling_size, matmul_dtype=jnp.float32)
    out_f32 = jax.block_until_ready(out_f32)
    assert out_f32.shape == (B, Cout, H // pooling_size, W // pooling_size)
    assert jnp.allclose(out_f32, ref, rtol=1e-4, atol=1e-4), "f32 kernel mismatch"

    # bf16 MXU operands (perf default): f32 accumulation/epilogue, bf16-level tolerance.
    out_bf16 = patch_conv_layer(x, conv_w, conv_b, gamma, beta,
                                pooling_size=pooling_size)
    out_bf16 = jax.block_until_ready(out_bf16)
    assert out_bf16.shape == (B, Cout, H // pooling_size, W // pooling_size)
    assert jnp.allclose(out_bf16, ref, rtol=3e-2, atol=3e-2), "bf16 kernel mismatch"

    print("KERNEL_OK")
</pallas_src>

<mosaic_0001>
module attributes {stable_mosaic.version = 11 : i64} {
  func.func @_stats_kernel(%arg0: i32, %arg1: memref<4x64x36xf32, #tpu.memory_space<vmem>>, %arg2: memref<36x128xf32, #tpu.memory_space<vmem>>, %arg3: memref<1x128xf32, #tpu.memory_space<vmem>>, %arg4: memref<1x128xf32, #tpu.memory_space<vmem>>) attributes {dimension_semantics = [#tpu.dimension_semantics<arbitrary>], iteration_bounds = array<i64: 2>, scalar_prefetch = 0 : i64, scratch_operands = 0 : i64, tpu.core_type = #tpu.core_type<tc>, window_params = [{transform_indices = @transform_0, window_bounds = array<i64: 4, 64, 36>}, {pipeline_mode = #tpu.pipeline_mode<synchronous>, transform_indices = @transform_1, window_bounds = array<i64: 36, 128>}, {pipeline_mode = #tpu.pipeline_mode<synchronous>, transform_indices = @transform_2, window_bounds = array<i64: 1, 128>}, {pipeline_mode = #tpu.pipeline_mode<synchronous>, transform_indices = @transform_3, window_bounds = array<i64: 1, 128>}]} {
    %c0_i32 = arith.constant 0 : i32
    %0 = arith.cmpi eq, %arg0, %c0_i32 : i32
    %1 = arith.extui %0 : i1 to i32
    %c0_i32_0 = arith.constant 0 : i32
    %2 = arith.cmpi ne, %1, %c0_i32_0 : i32
    scf.if %2 {
      %cst_32 = arith.constant 0.000000e+00 : f32
      %52 = vector.broadcast %cst_32 : f32 to vector<1x128xf32>
      %c0_33 = arith.constant 0 : index
      %c0_34 = arith.constant 0 : index
      %53 = vector.load %arg3[%c0_33, %c0_34] : memref<1x128xf32, #tpu.memory_space<vmem>>, vector<1x128xf32>
      tpu.vector_store %arg3[%c0_33, %c0_34], %52 {strides = array<i32>} : memref<1x128xf32, #tpu.memory_space<vmem>>, vector<1x128xf32>,
      %cst_35 = arith.constant 0.000000e+00 : f32
      %54 = vector.broadcast %cst_35 : f32 to vector<1x128xf32>
      %c0_36 = arith.constant 0 : index
      %c0_37 = arith.constant 0 : index
      %55 = vector.load %arg4[%c0_36, %c0_37] : memref<1x128xf32, #tpu.memory_space<vmem>>, vector<1x128xf32>
      tpu.vector_store %arg4[%c0_36, %c0_37], %54 {strides = array<i32>} : memref<1x128xf32, #tpu.memory_space<vmem>>, vector<1x128xf32>,
    } else {
    }
    %c0 = arith.constant 0 : index
    %c0_1 = arith.constant 0 : index
    %3 = vector.load %arg2[%c0, %c0_1] : memref<36x128xf32, #tpu.memory_space<vmem>>, vector<36x128xf32>
    %cst = arith.constant 0.000000e+00 : f32
    %4 = vector.broadcast %cst : f32 to vector<1x128xf32>
    %cst_2 = arith.constant 0.000000e+00 : f32
    %5 = vector.broadcast %cst_2 : f32 to vector<1x128xf32>
    %c0_3 = arith.constant 0 : index
    %c0_4 = arith.constant 0 : index
    %c0_5 = arith.constant 0 : index
    %6 = vector.load %arg1[%c0_3, %c0_4, %c0_5] : memref<4x64x36xf32, #tpu.memory_space<vmem>>, vector<1x64x36xf32>
    %7 = vector.shape_cast %6 : vector<1x64x36xf32> to vector<64x36xf32>
    %cst_6 = arith.constant dense<0.000000e+00> : vector<64x128xf32>
    %8 = tpu.matmul %7, %3, %cst_6 {dimension_numbers = #tpu.dot_dimension_numbers<[1], [0], [0], [1], [0, 0, 1, 1], [], []>} : vector<64x36xf32>, vector<36x128xf32>, vector<64x128xf32> -> vector<64x128xf32>
    %cst_7 = arith.constant dense<0.000000e+00> : vector<128xf32>
    %9 = vector.multi_reduction <add>, %8, %cst_7 [0] : vector<64x128xf32> to vector<128xf32>
    %10 = vector.shape_cast %9 : vector<128xf32> to vector<1x128xf32>
    %11 = arith.addf %4, %10 : vector<1x128xf32>
    %12 = arith.mulf %8, %8 : vector<64x128xf32>
    %cst_8 = arith.constant dense<0.000000e+00> : vector<128xf32>
    %13 = vector.multi_reduction <add>, %12, %cst_8 [0] : vector<64x128xf32> to vector<128xf32>
    %14 = vector.shape_cast %13 : vector<128xf32> to vector<1x128xf32>
    %15 = arith.addf %5, %14 : vector<1x128xf32>
    %c1 = arith.constant 1 : index
    %c0_9 = arith.constant 0 : index
    %c0_10 = arith.constant 0 : index
    %16 = vector.load %arg1[%c1, %c0_9, %c0_10] : memref<4x64x36xf32, #tpu.memory_space<vmem>>, vector<1x64x36xf32>
    %17 = vector.shape_cast %16 : vector<1x64x36xf32> to vector<64x36xf32>
    %cst_11 = arith.constant dense<0.000000e+00> : vector<64x128xf32>
    %18 = tpu.matmul %17, %3, %cst_11 {dimension_numbers = #tpu.dot_dimension_numbers<[1], [0], [0], [1], [0, 0, 1, 1], [], []>} : vector<64x36xf32>, vector<36x128xf32>, vector<64x128xf32> -> vector<64x128xf32>
    %cst_12 = arith.constant dense<0.000000e+00> : vector<128xf32>
    %19 = vector.multi_reduction <add>, %18, %cst_12 [0] : vector<64x128xf32> to vector<128xf32>
    %20 = vector.shape_cast %19 : vector<128xf32> to vector<1x128xf32>
    %21 = arith.addf %11, %20 : vector<1x128xf32>
    %22 = arith.mulf %18, %18 : vector<64x128xf32>
    %cst_13 = arith.constant dense<0.000000e+00> : vector<128xf32>
    %23 = vector.multi_reduction <add>, %22, %cst_13 [0] : vector<64x128xf32> to vector<128xf32>
    %24 = vector.shape_cast %23 : vector<128xf32> to vector<1x128xf32>
    %25 = arith.addf %15, %24 : vector<1x128xf32>
    %c2 = arith.constant 2 : index
    %c0_14 = arith.constant 0 : index
    %c0_15 = arith.constant 0 : index
    %26 = vector.load %arg1[%c2, %c0_14, %c0_15] : memref<4x64x36xf32, #tpu.memory_space<vmem>>, vector<1x64x36xf32>
    %27 = vector.shape_cast %26 : vector<1x64x36xf32> to vector<64x36xf32>
    %cst_16 = arith.constant dense<0.000000e+00> : vector<64x128xf32>
    %28 = tpu.matmul %27, %3, %cst_16 {dimension_numbers = #tpu.dot_dimension_numbers<[1], [0], [0], [1], [0, 0, 1, 1], [], []>} : vector<64x36xf32>, vector<36x128xf32>, vector<64x128xf32> -> vector<64x128xf32>
    %cst_17 = arith.constant dense<0.000000e+00> : vector<128xf32>
    %29 = vector.multi_reduction <add>, %28, %cst_17 [0] : vector<64x128xf32> to vector<128xf32>
    %30 = vector.shape_cast %29 : vector<128xf32> to vector<1x128xf32>
    %31 = arith.addf %21, %30 : vector<1x128xf32>
    %32 = arith.mulf %28, %28 : vector<64x128xf32>
    %cst_18 = arith.constant dense<0.000000e+00> : vector<128xf32>
    %33 = vector.multi_reduction <add>, %32, %cst_18 [0] : vector<64x128xf32> to vector<128xf32>
    %34 = vector.shape_cast %33 : vector<128xf32> to vector<1x128xf32>
    %35 = arith.addf %25, %34 : vector<1x128xf32>
    %c3 = arith.constant 3 : index
    %c0_19 = arith.constant 0 : index
    %c0_20 = arith.constant 0 : index
    %36 = vector.load %arg1[%c3, %c0_19, %c0_20] : memref<4x64x36xf32, #tpu.memory_space<vmem>>, vector<1x64x36xf32>
    %37 = vector.shape_cast %36 : vector<1x64x36xf32> to vector<64x36xf32>
    %cst_21 = arith.constant dense<0.000000e+00> : vector<64x128xf32>
    %38 = tpu.matmul %37, %3, %cst_21 {dimension_numbers = #tpu.dot_dimension_numbers<[1], [0], [0], [1], [0, 0, 1, 1], [], []>} : vector<64x36xf32>, vector<36x128xf32>, vector<64x128xf32> -> vector<64x128xf32>
    %cst_22 = arith.constant dense<0.000000e+00> : vector<128xf32>
    %39 = vector.multi_reduction <add>, %38, %cst_22 [0] : vector<64x128xf32> to vector<128xf32>
    %40 = vector.shape_cast %39 : vector<128xf32> to vector<1x128xf32>
    %41 = arith.addf %31, %40 : vector<1x128xf32>
    %42 = arith.mulf %38, %38 : vector<64x128xf32>
    %cst_23 = arith.constant dense<0.000000e+00> : vector<128xf32>
    %43 = vector.multi_reduction <add>, %42, %cst_23 [0] : vector<64x128xf32> to vector<128xf32>
    %44 = vector.shape_cast %43 : vector<128xf32> to vector<1x128xf32>
    %45 = arith.addf %35, %44 : vector<1x128xf32>
    %c0_24 = arith.constant 0 : index
    %c0_25 = arith.constant 0 : index
    %46 = vector.load %arg3[%c0_24, %c0_25] : memref<1x128xf32, #tpu.memory_space<vmem>>, vector<1x128xf32>
    %47 = arith.addf %46, %41 : vector<1x128xf32>
    %c0_26 = arith.constant 0 : index
    %c0_27 = arith.constant 0 : index
    %48 = vector.load %arg3[%c0_26, %c0_27] : memref<1x128xf32, #tpu.memory_space<vmem>>, vector<1x128xf32>
    tpu.vector_store %arg3[%c0_26, %c0_27], %47 {strides = array<i32>} : memref<1x128xf32, #tpu.memory_space<vmem>>, vector<1x128xf32>,
    %c0_28 = arith.constant 0 : index
    %c0_29 = arith.constant 0 : index
    %49 = vector.load %arg4[%c0_28, %c0_29] : memref<1x128xf32, #tpu.memory_space<vmem>>, vector<1x128xf32>
    %50 = arith.addf %49, %45 : vector<1x128xf32>
    %c0_30 = arith.constant 0 : index
    %c0_31 = arith.constant 0 : index
    %51 = vector.load %arg4[%c0_30, %c0_31] : memref<1x128xf32, #tpu.memory_space<vmem>>, vector<1x128xf32>
    tpu.vector_store %arg4[%c0_30, %c0_31], %50 {strides = array<i32>} : memref<1x128xf32, #tpu.memory_space<vmem>>, vector<1x128xf32>,
    return
  }
  func.func @transform_0(%arg0: i32) -> (i32, i32, i32) {
    %c0_i32 = arith.constant 0 : i32
    %c0_i32_0 = arith.constant 0 : i32
    %c0_i32_1 = arith.constant 0 : i32
    return %c0_i32, %arg0, %c0_i32_0 : i32, i32, i32
  }
  func.func @transform_1(%arg0: i32) -> (i32, i32) {
    %c0_i32 = arith.constant 0 : i32
    %c0_i32_0 = arith.constant 0 : i32
    %c0_i32_1 = arith.constant 0 : i32
    return %c0_i32, %c0_i32_0 : i32, i32
  }
  func.func @transform_2(%arg0: i32) -> (i32, i32) {
    %c0_i32 = arith.constant 0 : i32
    %c0_i32_0 = arith.constant 0 : i32
    %c0_i32_1 = arith.constant 0 : i32
    return %c0_i32, %c0_i32_0 : i32, i32
  }
  func.func @transform_3(%arg0: i32) -> (i32, i32) {
    %c0_i32 = arith.constant 0 : i32
    %c0_i32_0 = arith.constant 0 : i32
    %c0_i32_1 = arith.constant 0 : i32
    return %c0_i32, %c0_i32_0 : i32, i32
  }
}

module attributes {stable_mosaic.version = 11 : i64} {
  func.func @_apply_kernel(%arg0: i32, %arg1: memref<4x64x36xf32, #tpu.memory_space<vmem>>, %arg2: memref<36x128xf32, #tpu.memory_space<vmem>>, %arg3: memref<1x128xf32, #tpu.memory_space<vmem>>, %arg4: memref<1x128xf32, #tpu.memory_space<vmem>>, %arg5: memref<64x128xf32, #tpu.memory_space<vmem>>) attributes {dimension_semantics = [#tpu.dimension_semantics<parallel>], iteration_bounds = array<i64: 2>, scalar_prefetch = 0 : i64, scratch_operands = 0 : i64, tpu.core_type = #tpu.core_type<tc>, window_params = [{transform_indices = @transform_0, window_bounds = array<i64: 4, 64, 36>}, {pipeline_mode = #tpu.pipeline_mode<synchronous>, transform_indices = @transform_1, window_bounds = array<i64: 36, 128>}, {pipeline_mode = #tpu.pipeline_mode<synchronous>, transform_indices = @transform_2, window_bounds = array<i64: 1, 128>}, {pipeline_mode = #tpu.pipeline_mode<synchronous>, transform_indices = @transform_3, window_bounds = array<i64: 1, 128>}, {transform_indices = @transform_4, window_bounds = array<i64: 64, 128>}]} {
    %c0 = arith.constant 0 : index
    %c0_0 = arith.constant 0 : index
    %0 = vector.load %arg2[%c0, %c0_0] : memref<36x128xf32, #tpu.memory_space<vmem>>, vector<36x128xf32>
    %c0_1 = arith.constant 0 : index
    %c0_2 = arith.constant 0 : index
    %1 = vector.load %arg3[%c0_1, %c0_2] : memref<1x128xf32, #tpu.memory_space<vmem>>, vector<1x128xf32>
    %c0_3 = arith.constant 0 : index
    %c0_4 = arith.constant 0 : index
    %2 = vector.load %arg4[%c0_3, %c0_4] : memref<1x128xf32, #tpu.memory_space<vmem>>, vector<1x128xf32>
    %c0_5 = arith.constant 0 : index
    %c0_6 = arith.constant 0 : index
    %c0_7 = arith.constant 0 : index
    %3 = vector.load %arg1[%c0_5, %c0_6, %c0_7] : memref<4x64x36xf32, #tpu.memory_space<vmem>>, vector<1x64x36xf32>
    %4 = vector.shape_cast %3 : vector<1x64x36xf32> to vector<64x36xf32>
    %cst = arith.constant dense<0.000000e+00> : vector<64x128xf32>
    %5 = tpu.matmul %4, %0, %cst {dimension_numbers = #tpu.dot_dimension_numbers<[1], [0], [0], [1], [0, 0, 1, 1], [], []>} : vector<64x36xf32>, vector<36x128xf32>, vector<64x128xf32> -> vector<64x128xf32>
    %6 = vector.broadcast %1 : vector<1x128xf32> to vector<64x128xf32>
    %7 = arith.mulf %5, %6 : vector<64x128xf32>
    %8 = vector.broadcast %2 : vector<1x128xf32> to vector<64x128xf32>
    %9 = arith.addf %7, %8 : vector<64x128xf32>
    %cst_8 = arith.constant 0.000000e+00 : f32
    %10 = vector.broadcast %cst_8 : f32 to vector<64x128xf32>
    %11 = arith.maximumf %9, %10 : vector<64x128xf32>
    %c1 = arith.constant 1 : index
    %c0_9 = arith.constant 0 : index
    %c0_10 = arith.constant 0 : index
    %12 = vector.load %arg1[%c1, %c0_9, %c0_10] : memref<4x64x36xf32, #tpu.memory_space<vmem>>, vector<1x64x36xf32>
    %13 = vector.shape_cast %12 : vector<1x64x36xf32> to vector<64x36xf32>
    %cst_11 = arith.constant dense<0.000000e+00> : vector<64x128xf32>
    %14 = tpu.matmul %13, %0, %cst_11 {dimension_numbers = #tpu.dot_dimension_numbers<[1], [0], [0], [1], [0, 0, 1, 1], [], []>} : vector<64x36xf32>, vector<36x128xf32>, vector<64x128xf32> -> vector<64x128xf32>
    %15 = vector.broadcast %1 : vector<1x128xf32> to vector<64x128xf32>
    %16 = arith.mulf %14, %15 : vector<64x128xf32>
    %17 = vector.broadcast %2 : vector<1x128xf32> to vector<64x128xf32>
    %18 = arith.addf %16, %17 : vector<64x128xf32>
    %cst_12 = arith.constant 0.000000e+00 : f32
    %19 = vector.broadcast %cst_12 : f32 to vector<64x128xf32>
    %20 = arith.maximumf %18, %19 : vector<64x128xf32>
    %21 = arith.maximumf %11, %20 : vector<64x128xf32>
    %c2 = arith.constant 2 : index
    %c0_13 = arith.constant 0 : index
    %c0_14 = arith.constant 0 : index
    %22 = vector.load %arg1[%c2, %c0_13, %c0_14] : memref<4x64x36xf32, #tpu.memory_space<vmem>>, vector<1x64x36xf32>
    %23 = vector.shape_cast %22 : vector<1x64x36xf32> to vector<64x36xf32>
    %cst_15 = arith.constant dense<0.000000e+00> : vector<64x128xf32>
    %24 = tpu.matmul %23, %0, %cst_15 {dimension_numbers = #tpu.dot_dimension_numbers<[1], [0], [0], [1], [0, 0, 1, 1], [], []>} : vector<64x36xf32>, vector<36x128xf32>, vector<64x128xf32> -> vector<64x128xf32>
    %25 = vector.broadcast %1 : vector<1x128xf32> to vector<64x128xf32>
    %26 = arith.mulf %24, %25 : vector<64x128xf32>
    %27 = vector.broadcast %2 : vector<1x128xf32> to vector<64x128xf32>
    %28 = arith.addf %26, %27 : vector<64x128xf32>
    %cst_16 = arith.constant 0.000000e+00 : f32
    %29 = vector.broadcast %cst_16 : f32 to vector<64x128xf32>
    %30 = arith.maximumf %28, %29 : vector<64x128xf32>
    %31 = arith.maximumf %21, %30 : vector<64x128xf32>
    %c3 = arith.constant 3 : index
    %c0_17 = arith.constant 0 : index
    %c0_18 = arith.constant 0 : index
    %32 = vector.load %arg1[%c3, %c0_17, %c0_18] : memref<4x64x36xf32, #tpu.memory_space<vmem>>, vector<1x64x36xf32>
    %33 = vector.shape_cast %32 : vector<1x64x36xf32> to vector<64x36xf32>
    %cst_19 = arith.constant dense<0.000000e+00> : vector<64x128xf32>
    %34 = tpu.matmul %33, %0, %cst_19 {dimension_numbers = #tpu.dot_dimension_numbers<[1], [0], [0], [1], [0, 0, 1, 1], [], []>} : vector<64x36xf32>, vector<36x128xf32>, vector<64x128xf32> -> vector<64x128xf32>
    %35 = vector.broadcast %1 : vector<1x128xf32> to vector<64x128xf32>
    %36 = arith.mulf %34, %35 : vector<64x128xf32>
    %37 = vector.broadcast %2 : vector<1x128xf32> to vector<64x128xf32>
    %38 = arith.addf %36, %37 : vector<64x128xf32>
    %cst_20 = arith.constant 0.000000e+00 : f32
    %39 = vector.broadcast %cst_20 : f32 to vector<64x128xf32>
    %40 = arith.maximumf %38, %39 : vector<64x128xf32>
    %41 = arith.maximumf %31, %40 : vector<64x128xf32>
    %c0_21 = arith.constant 0 : index
    %c0_22 = arith.constant 0 : index
    %42 = vector.load %arg5[%c0_21, %c0_22] : memref<64x128xf32, #tpu.memory_space<vmem>>, vector<64x128xf32>
    tpu.vector_store %arg5[%c0_21, %c0_22], %41 {strides = array<i32>} : memref<64x128xf32, #tpu.memory_space<vmem>>, vector<64x128xf32>,
    return
  }
  func.func @transform_0(%arg0: i32) -> (i32, i32, i32) {
    %c0_i32 = arith.constant 0 : i32
    %c0_i32_0 = arith.constant 0 : i32
    %c0_i32_1 = arith.constant 0 : i32
    return %c0_i32, %arg0, %c0_i32_0 : i32, i32, i32
  }
  func.func @transform_1(%arg0: i32) -> (i32, i32) {
    %c0_i32 = arith.constant 0 : i32
    %c0_i32_0 = arith.constant 0 : i32
    %c0_i32_1 = arith.constant 0 : i32
    return %c0_i32, %c0_i32_0 : i32, i32
  }
  func.func @transform_2(%arg0: i32) -> (i32, i32) {
    %c0_i32 = arith.constant 0 : i32
    %c0_i32_0 = arith.constant 0 : i32
    %c0_i32_1 = arith.constant 0 : i32
    return %c0_i32, %c0_i32_0 : i32, i32
  }
  func.func @transform_3(%arg0: i32) -> (i32, i32) {
    %c0_i32 = arith.constant 0 : i32
    %c0_i32_0 = arith.constant 0 : i32
    %c0_i32_1 = arith.constant 0 : i32
    return %c0_i32, %c0_i32_0 : i32, i32
  }
  func.func @transform_4(%arg0: i32) -> (i32, i32) {
    %c0_i32 = arith.constant 0 : i32
    %c0_i32_0 = arith.constant 0 : i32
    return %arg0, %c0_i32 : i32, i32
  }
}

</mosaic_0001>

<llo_original>
// kernel: patch_conv_layer.3
$region0: #{patch_conv_layer.3}
  #allocation0 [shape = 'u32[]', space=smem, size = 0x4, offset = 0x4, fixed_abs, tag = 'smem constant byte address 0x4 - core index']
  #allocation1 [shape = 'u32[144,128]{1,0:T(1,128)}', space=vmem, size = 0x12000, scoped, tag = 'internal scratch']
  %s0 = inlined_call_operand.vmem [shape: f32[4,128,36], index: 0, kind: input, shape index: {}]
  %s1 = inlined_call_operand.vmem [shape: f32[36,128], index: 1, kind: input, shape index: {}]
  %s2 = inlined_call_operand.vmem [shape: f32[1,128], index: 2, kind: input, shape index: {}]
  %s3 = inlined_call_operand.vmem [shape: f32[1,128], index: 3, kind: input, shape index: {}]
  %s4 = inlined_call_operand.vmem [shape: f32[128,128], index: 4, kind: output, shape index: {}]
  %s5 = sld [smem:[#allocation0]]
  $region87: #{patch_conv_layer.3} parent=0
    _
  %s7 = ssub.s32 1, %s5
  %s8 = scalar_select 0, %s7, %s5
  $region1: #{patch_conv_layer.3} parent=0
    #allocation2 [shape = 'u8[262144]{0}', space=vmem, size = 0x40000, scoped, tag = 'input window, operand 0']
    loop: start=0, step=1, limit=4
    $region2: #{patch_conv_layer.3} parent=1 // loop_pre_header
      _
    $region3: #{patch_conv_layer.3} parent=1 // loop_header
      %s10 = sphi 0, %s14
      %p11 = scmp.ge.s32.totalorder %s10, 4
      %s20 = sphi 0, %s22
      %s23 = sphi 0, %s20
      %s24 = sphi 0, %s23
      %s40 = sphi 0, %s24
      %s44 = sphi 0, %s44
      %s46 = sphi 0, %s44
      %s47 = sphi 0, %s46
      %s61 = sphi 0, %s47
      %s65 = sphi 0, %s65
      %s67 = sphi 0, %s65
      %s68 = sphi 0, %s67
      %s82 = sphi 0, %s68
      %s86 = sphi 0, %s86
      %s88 = sphi 0, %s86
      %s89 = sphi 0, %s88
      %s103 = sphi 0, %s89
      %s109 = sphi 0, %s111
      %s112 = sphi 0, %s109
      %s113 = sphi 0, %s112
      %s129 = sphi 0, %s113
    $region4: #{patch_conv_layer.3} parent=1 // loop_header_branch
      %13 = sbr.rel (%p11) target = $region8
    $region5: #{patch_conv_layer.3} parent=1 // loop_body
      %s15 = ssub.s32 %s10, 1
      %s16 = ssub.s32 %s10, 2
      %s17 = sadd.s32 %s10, 1
      %s18 = ssub.s32 %s10, %s17
      %p19 = scmp.eq.s32.totalorder %s18, 0
      %s21 = sadd.s32 %s20, 1
      %s22 = scalar_select %p19, %s20, %s21
      %p25 = pneg %p19
      %p26 = scmp.eq.s32.totalorder %s10, 1
      %p27 = por %p25, %p26
      %p28 = scmp.ne.s32.totalorder %s20, %s23
      %p29 = scmp.eq.s32.totalorder %s10, 0
      %p30 = por %p28, %p29
      %p31 = scmp.ne.s32.totalorder %s20, %s23
      %p32 = scmp.eq.s32.totalorder %s15, 1
      %p33 = por %p31, %p32
      %p34 = scmp.ne.s32.totalorder %s23, %s24
      %p35 = scmp.eq.s32.totalorder %s15, 0
      %p36 = por %p34, %p35
      %p37 = scmp.ne.s32.totalorder %s23, %s24
      %p38 = scmp.eq.s32.totalorder %s16, 1
      %p39 = por %p37, %p38
      %p41 = scmp.ne.s32.totalorder %s24, %s40
      %p42 = scmp.eq.s32.totalorder %s16, 0
      %p43 = por %p41, %p42
      %s45 = sadd.s32 %s44, 1
      %p48 = scmp.eq.s32.totalorder %s10, 1
      %p49 = scmp.ne.s32.totalorder %s44, %s46
      %p50 = scmp.eq.s32.totalorder %s10, 0
      %p51 = por %p49, %p50
      %p52 = scmp.ne.s32.totalorder %s44, %s46
      %p53 = scmp.eq.s32.totalorder %s15, 1
      %p54 = por %p52, %p53
      %p55 = scmp.ne.s32.totalorder %s46, %s47
      %p56 = scmp.eq.s32.totalorder %s15, 0
      %p57 = por %p55, %p56
      %p58 = scmp.ne.s32.totalorder %s46, %s47
      %p59 = scmp.eq.s32.totalorder %s16, 1
      %p60 = por %p58, %p59
      %p62 = scmp.ne.s32.totalorder %s47, %s61
      %p63 = scmp.eq.s32.totalorder %s16, 0
      %p64 = por %p62, %p63
      %s66 = sadd.s32 %s65, 1
      %p69 = scmp.eq.s32.totalorder %s10, 1
      %p70 = scmp.ne.s32.totalorder %s65, %s67
      %p71 = scmp.eq.s32.totalorder %s10, 0
      %p72 = por %p70, %p71
      %p73 = scmp.ne.s32.totalorder %s65, %s67
      %p74 = scmp.eq.s32.totalorder %s15, 1
      %p75 = por %p73, %p74
      %p76 = scmp.ne.s32.totalorder %s67, %s68
      %p77 = scmp.eq.s32.totalorder %s15, 0
      %p78 = por %p76, %p77
      %p79 = scmp.ne.s32.totalorder %s67, %s68
      %p80 = scmp.eq.s32.totalorder %s16, 1
      %p81 = por %p79, %p80
      %p83 = scmp.ne.s32.totalorder %s68, %s82
      %p84 = scmp.eq.s32.totalorder %s16, 0
      %p85 = por %p83, %p84
      %s87 = sadd.s32 %s86, 1
      %p90 = scmp.eq.s32.totalorder %s10, 1
      %p91 = scmp.ne.s32.totalorder %s86, %s88
      %p92 = scmp.eq.s32.totalorder %s10, 0
      %p93 = por %p91, %p92
      %p94 = scmp.ne.s32.totalorder %s86, %s88
      %p95 = scmp.eq.s32.totalorder %s15, 1
      %p96 = por %p94, %p95
      %p97 = scmp.ne.s32.totalorder %s88, %s89
      %p98 = scmp.eq.s32.totalorder %s15, 0
      %p99 = por %p97, %p98
      %p100 = scmp.ne.s32.totalorder %s88, %s89
      %p101 = scmp.eq.s32.totalorder %s16, 1
      %p102 = por %p100, %p101
      %p104 = scmp.ne.s32.totalorder %s89, %s103
      %p105 = scmp.eq.s32.totalorder %s16, 0
      %p106 = por %p104, %p105
      %s107 = ssub.s32 %s10, %s17
      %p108 = scmp.eq.s32.totalorder %s107, 0
      %s110 = sadd.s32 %s109, 1
      %s111 = scalar_select %p108, %s109, %s110
      %p114 = pneg %p108
      %p115 = scmp.eq.s32.totalorder %s10, 1
      %p116 = por %p114, %p115
      %p117 = scmp.ne.s32.totalorder %s109, %s112
      %p118 = scmp.eq.s32.totalorder %s10, 0
      %p119 = por %p117, %p118
      %p120 = scmp.ne.s32.totalorder %s109, %s112
      %p121 = scmp.eq.s32.totalorder %s15, 1
      %p122 = por %p120, %p121
      %p123 = scmp.ne.s32.totalorder %s112, %s113
      %p124 = scmp.eq.s32.totalorder %s15, 0
      %p125 = por %p123, %p124
      %p126 = scmp.ne.s32.totalorder %s112, %s113
      %p127 = scmp.eq.s32.totalorder %s16, 1
      %p128 = por %p126, %p127
      %p130 = scmp.ne.s32.totalorder %s113, %s129
      %p131 = scmp.eq.s32.totalorder %s16, 0
      %p132 = por %p130, %p131
      %p133 = scmp.le.s32.totalorder 1, %s10
      %p134 = scmp.lt.s32.totalorder %s10, 3
      %p135 = pnand %p133, %p134
      %p136 = pneg %p135
      // Predicated region
      $region9: #{patch_conv_layer.3} parent=5 // pred_check
        _
      $region10: #{patch_conv_layer.3} parent=5 // pred_check_branch
        %138 = sbr.rel (%p135) target = $region12
      $region11: #{patch_conv_layer.3} parent=5 // pred_region
        %s139 = ssub.s32 %s10, 1
        // Predicated region
        $region13: #{patch_conv_layer.3} parent=11 // pred_check
          %p140 = pneg %p57
        $region14: #{patch_conv_layer.3} parent=11 // pred_check_branch
          %142 = sbr.rel (%p140) target = $region16
        $region15: #{patch_conv_layer.3} parent=11 // pred_region
          _
        $region16: #{patch_conv_layer.3} parent=11 // pred_fallthru
          _
        // Predicated region
        $region17: #{patch_conv_layer.3} parent=11 // pred_check
          %p143 = pneg %p78
        $region18: #{patch_conv_layer.3} parent=11 // pred_check_branch
          %145 = sbr.rel (%p143) target = $region20
        $region19: #{patch_conv_layer.3} parent=11 // pred_region
          _
        $region20: #{patch_conv_layer.3} parent=11 // pred_fallthru
          _
        // Predicated region
        $region21: #{patch_conv_layer.3} parent=11 // pred_check
          %p146 = pneg %p99
        $region22: #{patch_conv_layer.3} parent=11 // pred_check_branch
          %148 = sbr.rel (%p146) target = $region24
        $region23: #{patch_conv_layer.3} parent=11 // pred_region
          _
        $region24: #{patch_conv_layer.3} parent=11 // pred_fallthru
          _
      $region12: #{patch_conv_layer.3} parent=5 // pred_fallthru
        _
      %p149 = scmp.lt.s32.totalorder %s10, 2
      // Predicated region
      $region25: #{patch_conv_layer.3} parent=5 // pred_check
        %p150 = pneg %p149
      $region26: #{patch_conv_layer.3} parent=5 // pred_check_branch
        %152 = sbr.rel (%p150) target = $region28
      $region27: #{patch_conv_layer.3} parent=5 // pred_region
        // Predicated region
        $region29: #{patch_conv_layer.3} parent=27 // pred_check
          %p153 = pneg %p30
        $region30: #{patch_conv_layer.3} parent=27 // pred_check_branch
          %155 = sbr.rel (%p153) target = $region32
        $region31: #{patch_conv_layer.3} parent=27 // pred_region
          %s156 = sand.u32 %s20, 1
          %s157 = sand.u32 %s20, 1
          %s158 = smul.addr %s157, 256
          %s159 = scalar_lea.vmem [#allocation2], %s158
          %s160 = smul.u32 8, %s10
          %s161 = smul.addr %s160, 8
          %s162 = scalar_lea.vmem %s0, %s161
          // Predicated region
          $region33: #{patch_conv_layer.3} parent=31 // pred_check
            _
          $region34: #{patch_conv_layer.3} parent=31 // pred_check_branch
            %164 = sbr.rel (0) target = $region36
          $region35: #{patch_conv_layer.3} parent=31 // pred_region
            // Predicated region
            $region37: #{patch_conv_layer.3} parent=35 // pred_check
              _
            $region38: #{patch_conv_layer.3} parent=35 // pred_check_branch
              %166 = sbr.rel (0) target = $region40
            $region39: #{patch_conv_layer.3} parent=35 // pred_region
              // Predicated region
              $region52: #{patch_conv_layer.3} parent=39 // pred_check
                _
              $region53: #{patch_conv_layer.3} parent=39 // pred_check_branch
                %243 = sbr.rel (0) target = $region55
              $region54: #{patch_conv_layer.3} parent=39 // pred_region
                loop: start=0, step=1, limit=1
                $region56: #{patch_conv_layer.3} parent=54 // loop_pre_header
                  _
                $region57: #{patch_conv_layer.3} parent=54 // loop_header
                  %s245 = sphi 0, %s249
                  %p246 = scmp.ge.s32.totalorder %s245, 1
                  %s250 = sphi %s162, %s162
                  %s251 = sphi %s159, %s159
                $region58: #{patch_conv_layer.3} parent=54 // loop_header_branch
                  %248 = sbr.rel (%p246) target = $region62
                $region59: #{patch_conv_layer.3} parent=54 // loop_body
                  %v252 = vld [vmem:[%s250] sm:$0xff]
                  %253 = vst [vmem:[%s251] sm:$0xff] %v252
                  %v254 = vld [vmem:[%s250 + $0x8] sm:$0xff]
                  %255 = vst [vmem:[%s251 + $0x8] sm:$0xff] %v254
                  %v256 = vld [vmem:[%s250 + $0x10] sm:$0xff]
                  %257 = vst [vmem:[%s251 + $0x10] sm:$0xff] %v256
                  %v258 = vld [vmem:[%s250 + $0x18] sm:$0xff]
                  %259 = vst [vmem:[%s251 + $0x18] sm:$0xff] %v258
                  %v260 = vld [vmem:[%s250 + $0x20] sm:$0xff]
                  %261 = vst [vmem:[%s251 + $0x20] sm:$0xff] %v260
                  %v262 = vld [vmem:[%s250 + $0x28] sm:$0xff]
                  %263 = vst [vmem:[%s251 + $0x28] sm:$0xff] %v262
                  %v264 = vld [vmem:[%s250 + $0x30] sm:$0xff]
                  %265 = vst [vmem:[%s251 + $0x30] sm:$0xff] %v264
                  %v266 = vld [vmem:[%s250 + $0x38] sm:$0xff]
                  %267 = vst [vmem:[%s251 + $0x38] sm:$0xff] %v266
                  %v268 = vld [vmem:[%s250 + $0x80] sm:$0xff]
                  %269 = vst [vmem:[%s251 + $0x40] sm:$0xff] %v268
                  %v270 = vld [vmem:[%s250 + $0x88] sm:$0xff]
                  %271 = vst [vmem:[%s251 + $0x48] sm:$0xff] %v270
                  %v272 = vld [vmem:[%s250 + $0x90] sm:$0xff]
                  %273 = vst [vmem:[%s251 + $0x50] sm:$0xff] %v272
                  %v274 = vld [vmem:[%s250 + $0x98] sm:$0xff]
                  %275 = vst [vmem:[%s251 + $0x58] sm:$0xff] %v274
                  %v276 = vld [vmem:[%s250 + $0xa0] sm:$0xff]
                  %277 = vst [vmem:[%s251 + $0x60] sm:$0xff] %v276
                  %v278 = vld [vmem:[%s250 + $0xa8] sm:$0xff]
                  %279 = vst [vmem:[%s251 + $0x68] sm:$0xff] %v278
                  %v280 = vld [vmem:[%s250 + $0xb0] sm:$0xff]
                  %281 = vst [vmem:[%s251 + $0x70] sm:$0xff] %v280
                  %v282 = vld [vmem:[%s250 + $0xb8] sm:$0xff]
                  %283 = vst [vmem:[%s251 + $0x78] sm:$0xff] %v282
                  %v284 = vld [vmem:[%s250 + $0x100] sm:$0xff]
                  %285 = vst [vmem:[%s251 + $0x80] sm:$0xff] %v284
                  %v286 = vld [vmem:[%s250 + $0x108] sm:$0xff]
                  %287 = vst [vmem:[%s251 + $0x88] sm:$0xff] %v286
                  %v288 = vld [vmem:[%s250 + $0x110] sm:$0xff]
                  %289 = vst [vmem:[%s251 + $0x90] sm:$0xff] %v288
                  %v290 = vld [vmem:[%s250 + $0x118] sm:$0xff]
                  %291 = vst [vmem:[%s251 + $0x98] sm:$0xff] %v290
                  %v292 = vld [vmem:[%s250 + $0x120] sm:$0xff]
                  %293 = vst [vmem:[%s251 + $0xa0] sm:$0xff] %v292
                  %v294 = vld [vmem:[%s250 + $0x128] sm:$0xff]
                  %295 = vst [vmem:[%s251 + $0xa8] sm:$0xff] %v294
                  %v296 = vld [vmem:[%s250 + $0x130] sm:$0xff]
                  %297 = vst [vmem:[%s251 + $0xb0] sm:$0xff] %v296
                  %v298 = vld [vmem:[%s250 + $0x138] sm:$0xff]
                  %299 = vst [vmem:[%s251 + $0xb8] sm:$0xff] %v298
                  %v300 = vld [vmem:[%s250 + $0x180] sm:$0xff]
                  %301 = vst [vmem:[%s251 + $0xc0] sm:$0xff] %v300
                  %v302 = vld [vmem:[%s250 + $0x188] sm:$0xff]
                  %303 = vst [vmem:[%s251 + $0xc8] sm:$0xff] %v302
                  %v304 = vld [vmem:[%s250 + $0x190] sm:$0xff]
                  %305 = vst [vmem:[%s251 + $0xd0] sm:$0xff] %v304
                  %v306 = vld [vmem:[%s250 + $0x198] sm:$0xff]
                  %307 = vst [vmem:[%s251 + $0xd8] sm:$0xff] %v306
                  %v308 = vld [vmem:[%s250 + $0x1a0] sm:$0xff]
                  %309 = vst [vmem:[%s251 + $0xe0] sm:$0xff] %v308
                  %v310 = vld [vmem:[%s250 + $0x1a8] sm:$0xff]
                  %311 = vst [vmem:[%s251 + $0xe8] sm:$0xff] %v310
                  %v312 = vld [vmem:[%s250 + $0x1b0] sm:$0xff]
                  %313 = vst [vmem:[%s251 + $0xf0] sm:$0xff] %v312
                  %v314 = vld [vmem:[%s250 + $0x1b8] sm:$0xff]
                  %315 = vst [vmem:[%s251 + $0xf8] sm:$0xff] %v314
                $region60: #{patch_conv_layer.3} parent=54 // loop_footer
                  %s249 = sadd.s32 1, %s245
                $region61: #{patch_conv_layer.3} parent=54 // loop_footer_branch
                  %244 = sbr.rel target = $region57
                $region62: #{patch_conv_layer.3} parent=54 // loop_exit
                  _
              $region55: #{patch_conv_layer.3} parent=39 // pred_fallthru
                _
              // Predicated region
              $region63: #{patch_conv_layer.3} parent=39 // pred_check
                _
              $region64: #{patch_conv_layer.3} parent=39 // pred_check_branch
                %317 = sbr.rel target = $region66
              $region65: #{patch_conv_layer.3} parent=39 // pred_region
                _
              $region66: #{patch_conv_layer.3} parent=39 // pred_fallthru
                _
            $region40: #{patch_conv_layer.3} parent=35 // pred_fallthru
              _
            // Predicated region
            $region41: #{patch_conv_layer.3} parent=35 // pred_check
              _
            $region42: #{patch_conv_layer.3} parent=35 // pred_check_branch
              %168 = sbr.rel target = $region44
            $region43: #{patch_conv_layer.3} parent=35 // pred_region
              loop: start=0, step=1, limit=1
              $region45: #{patch_conv_layer.3} parent=43 // loop_pre_header
                _
              $region46: #{patch_conv_layer.3} parent=43 // loop_header
                %s171 = sphi 0, %s175
                %p172 = scmp.ge.s32.totalorder %s171, 1
                %s176 = sphi %s162, %s162
                %s177 = sphi %s159, %s159
              $region47: #{patch_conv_layer.3} parent=43 // loop_header_branch
                %174 = sbr.rel (%p172) target = $region51
              $region48: #{patch_conv_layer.3} parent=43 // loop_body
                %v178 = vld [vmem:[%s176] sm:$0xff]
                %179 = vst [vmem:[%s177] sm:$0xff] %v178
                %v180 = vld [vmem:[%s176 + $0x8] sm:$0xff]
                %181 = vst [vmem:[%s177 + $0x8] sm:$0xff] %v180
                %v182 = vld [vmem:[%s176 + $0x10] sm:$0xff]
                %183 = vst [vmem:[%s177 + $0x10] sm:$0xff] %v182
                %v184 = vld [vmem:[%s176 + $0x18] sm:$0xff]
                %185 = vst [vmem:[%s177 + $0x18] sm:$0xff] %v184
                %v186 = vld [vmem:[%s176 + $0x20] sm:$0xff]
                %187 = vst [vmem:[%s177 + $0x20] sm:$0xff] %v186
                %v188 = vld [vmem:[%s176 + $0x28] sm:$0xff]
                %189 = vst [vmem:[%s177 + $0x28] sm:$0xff] %v188
                %v190 = vld [vmem:[%s176 + $0x30] sm:$0xff]
                %191 = vst [vmem:[%s177 + $0x30] sm:$0xff] %v190
                %v192 = vld [vmem:[%s176 + $0x38] sm:$0xff]
                %193 = vst [vmem:[%s177 + $0x38] sm:$0xff] %v192
                %v194 = vld [vmem:[%s176 + $0x80] sm:$0xff]
                %195 = vst [vmem:[%s177 + $0x40] sm:$0xff] %v194
                %v196 = vld [vmem:[%s176 + $0x88] sm:$0xff]
                %197 = vst [vmem:[%s177 + $0x48] sm:$0xff] %v196
                %v198 = vld [vmem:[%s176 + $0x90] sm:$0xff]
                %199 = vst [vmem:[%s177 + $0x50] sm:$0xff] %v198
                %v200 = vld [vmem:[%s176 + $0x98] sm:$0xff]
                %201 = vst [vmem:[%s177 + $0x58] sm:$0xff] %v200
                %v202 = vld [vmem:[%s176 + $0xa0] sm:$0xff]
                %203 = vst [vmem:[%s177 + $0x60] sm:$0xff] %v202
                %v204 = vld [vmem:[%s176 + $0xa8] sm:$0xff]
                %205 = vst [vmem:[%s177 + $0x68] sm:$0xff] %v204
                %v206 = vld [vmem:[%s176 + $0xb0] sm:$0xff]
                %207 = vst [vmem:[%s177 + $0x70] sm:$0xff] %v206
                %v208 = vld [vmem:[%s176 + $0xb8] sm:$0xff]
                %209 = vst [vmem:[%s177 + $0x78] sm:$0xff] %v208
                %v210 = vld [vmem:[%s176 + $0x100] sm:$0xff]
                %211 = vst [vmem:[%s177 + $0x80] sm:$0xff] %v210
                %v212 = vld [vmem:[%s176 + $0x108] sm:$0xff]
                %213 = vst [vmem:[%s177 + $0x88] sm:$0xff] %v212
                %v214 = vld [vmem:[%s176 + $0x110] sm:$0xff]
                %215 = vst [vmem:[%s177 + $0x90] sm:$0xff] %v214
                %v216 = vld [vmem:[%s176 + $0x118] sm:$0xff]
                %217 = vst [vmem:[%s177 + $0x98] sm:$0xff] %v216
                %v218 = vld [vmem:[%s176 + $0x120] sm:$0xff]
                %219 = vst [vmem:[%s177 + $0xa0] sm:$0xff] %v218
                %v220 = vld [vmem:[%s176 + $0x128] sm:$0xff]
                %221 = vst [vmem:[%s177 + $0xa8] sm:$0xff] %v220
                %v222 = vld [vmem:[%s176 + $0x130] sm:$0xff]
                %223 = vst [vmem:[%s177 + $0xb0] sm:$0xff] %v222
                %v224 = vld [vmem:[%s176 + $0x138] sm:$0xff]
                %225 = vst [vmem:[%s177 + $0xb8] sm:$0xff] %v224
                %v226 = vld [vmem:[%s176 + $0x180] sm:$0xff]
                %227 = vst [vmem:[%s177 + $0xc0] sm:$0xff] %v226
                %v228 = vld [vmem:[%s176 + $0x188] sm:$0xff]
                %229 = vst [vmem:[%s177 + $0xc8] sm:$0xff] %v228
                %v230 = vld [vmem:[%s176 + $0x190] sm:$0xff]
                %231 = vst [vmem:[%s177 + $0xd0] sm:$0xff] %v230
                %v232 = vld [vmem:[%s176 + $0x198] sm:$0xff]
                %233 = vst [vmem:[%s177 + $0xd8] sm:$0xff] %v232
                %v234 = vld [vmem:[%s176 + $0x1a0] sm:$0xff]
                %235 = vst [vmem:[%s177 + $0xe0] sm:$0xff] %v234
                %v236 = vld [vmem:[%s176 + $0x1a8] sm:$0xff]
                %237 = vst [vmem:[%s177 + $0xe8] sm:$0xff] %v236
                %v238 = vld [vmem:[%s176 + $0x1b0] sm:$0xff]
                %239 = vst [vmem:[%s177 + $0xf0] sm:$0xff] %v238
                %v240 = vld [vmem:[%s176 + $0x1b8] sm:$0xff]
                %241 = vst [vmem:[%s177 + $0xf8] sm:$0xff] %v240
              $region49: #{patch_conv_layer.3} parent=43 // loop_footer
                %s175 = sadd.s32 1, %s171
              $region50: #{patch_conv_layer.3} parent=43 // loop_footer_branch
                %170 = sbr.rel target = $region46
              $region51: #{patch_conv_layer.3} parent=43 // loop_exit
                _
            $region44: #{patch_conv_layer.3} parent=35 // pred_fallthru
              _
          $region36: #{patch_conv_layer.3} parent=31 // pred_fallthru
            _
          %318 = vnop
        $region32: #{patch_conv_layer.3} parent=27 // pred_fallthru
          _
      $region28: #{patch_conv_layer.3} parent=5 // pred_fallthru
        _
      %p319 = scmp.le.s32.totalorder 1, %s10
      %p320 = scmp.lt.s32.totalorder %s10, 3
      %p321 = pnand %p319, %p320
      %p322 = pneg %p321
      // Predicated region
      $region67: #{patch_conv_layer.3} parent=5 // pred_check
        _
      $region68: #{patch_conv_layer.3} parent=5 // pred_check_branch
        %324 = sbr.rel (%p321) target = $region70
      $region69: #{patch_conv_layer.3} parent=5 // pred_region
        %s325 = ssub.s32 %s10, 1
        %s326 = sand.u32 %s23, 1
        %s327 = sand.u32 %s23, 1
        %s328 = smul.addr %s327, 256
        %s329 = scalar_lea.vmem [#allocation2], %s328
        // Predicated region
        $region71: #{patch_conv_layer.3} parent=69 // pred_check
          %p330 = pneg %p36
        $region72: #{patch_conv_layer.3} parent=69 // pred_check_branch
          %332 = sbr.rel (%p330) target = $region74
        $region73: #{patch_conv_layer.3} parent=69 // pred_region
          _
        $region74: #{patch_conv_layer.3} parent=69 // pred_fallthru
          _
        %s333 = sand.u32 %s23, 1
        %s334 = sand.u32 %s23, 1
        %s335 = smul.addr %s334, 256
        %s336 = scalar_lea.vmem [#allocation2], %s335
        %p337 = pneg %p36
        %p338 = pneg %p33
        %p339 = pneg %p57
        %p340 = pneg %p54
        %p341 = pneg %p78
        %p342 = pneg %p75
        %p343 = pneg %p99
        %p344 = pneg %p96
        %p345 = pneg %p125
        %p346 = pneg %p122
        %s347 = smul.u32 8, %s15
        %p348 = scmp.lt.s32.totalorder %s347, 15
        %s349 = scalar_select %p348, %s347, 15
        %s350 = smul.addr %s349, 8
        %s351 = scalar_lea.vmem %s4, %s350
        %s352 = smul.u32 8, %s15
        %s353 = smul.u32 8, %s15
        %p354 = scmp.lt.s32.totalorder %s353, 15
        %s355 = scalar_select %p354, %s353, 15
        %s356 = smul.addr %s355, 8
        %s357 = scalar_lea.vmem %s4, %s356
        %s358 = smul.u32 8, %s15
        %v359 = vld [vmem:[%s1] sm:$0xff]
        %v360 = vld [vmem:[%s1 + $0x8] sm:$0xff]
        %v361 = vld [vmem:[%s1 + $0x10] sm:$0xff]
        %v362 = vld [vmem:[%s1 + $0x18] sm:$0xff]
        %v363 = vld [vmem:[%s1 + $0x20] sm:$0xf]
        %v364 = vld [vmem:[%s2] sm:$0x1]
        %v365 = vld [vmem:[%s3] sm:$0x1]
        %v366 = vld [vmem:[%s329] sm:$0xff]
        %v367 = vld [vmem:[%s329 + $0x8] sm:$0xff]
        %v368 = vld [vmem:[%s329 + $0x10] sm:$0xff]
        %v369 = vld [vmem:[%s329 + $0x18] sm:$0xff]
        %v370 = vld [vmem:[%s329 + $0x20] sm:$0xff]
        %v371 = vld [vmem:[%s329 + $0x28] sm:$0xff]
        %v372 = vld [vmem:[%s329 + $0x30] sm:$0xff]
        %v373 = vld [vmem:[%s329 + $0x38] sm:$0xff]
        %vm374 = vcmask 293888
        %v376 = vsel %vm374, %v366, 0
        %v379 = vsel %vm374, %v367, 0
        %v382 = vsel %vm374, %v368, 0
        %v385 = vsel %vm374, %v369, 0
        %v388 = vsel %vm374, %v370, 0
        %v391 = vsel %vm374, %v371, 0
        %v394 = vsel %vm374, %v372, 0
        %v397 = vsel %vm374, %v373, 0
        %vm399 = vcmask 1043456
        %v401 = vsel %vm399, %v363, 0
        %403 = vmatprep.subr.mxu0 0.0
        %404 = vmatpush1.msra.mxu0 %v359
        %405 = vmatprep.subr.mxu0 0.0
        %406 = vmatpush1.msra.mxu0 %v360
        %407 = vmatprep.subr.mxu0 0.0
        %408 = vmatpush1.msra.mxu0 %v361
        %409 = vmatprep.subr.mxu0 0.0
        %410 = vmatpush1.msra.mxu0 %v362
        %411 = vmatprep.subr.mxu0 0.0
        %412 = vmatpush1.msra.mxu0 %v401
        %413 = vmatprep.subr.mxu0 0.0
        %414 = vmatpush1.msra.mxu0 0.0
        %415 = vmatprep.subr.mxu0 0.0
        %416 = vmatpush1.msra.mxu0 0.0
        %417 = vmatprep.subr.mxu0 0.0
        %418 = vmatpush1.msra.mxu0 0.0
        %419 = vmatprep.subr.mxu0 0.0
        %420 = vmatpush1.msra.mxu0 0.0
        %421 = vmatprep.subr.mxu0 0.0
        %422 = vmatpush1.msra.mxu0 0.0
        %423 = vmatprep.subr.mxu0 0.0
        %424 = vmatpush1.msra.mxu0 0.0
        %425 = vmatprep.subr.mxu0 0.0
        %426 = vmatpush1.msra.mxu0 0.0
        %427 = vmatprep.subr.mxu0 0.0
        %428 = vmatpush1.msra.mxu0 0.0
        %429 = vmatprep.subr.mxu0 0.0
        %430 = vmatpush1.msra.mxu0 0.0
        %431 = vmatprep.subr.mxu0 0.0
        %432 = vmatpush1.msra.mxu0 0.0
        %433 = vmatprep.subr.mxu0 0.0
        %434 = vmatpush1.msra.mxu0 0.0
        %435 = vmatprep.subr.mxu0 0.0
        %436 = vmatpush1.msra.mxu0 0.0
        %437 = vmatprep.subr.mxu0 0.0
        %438 = vmatpush1.msra.mxu0 0.0
        %439 = vmatprep.subr.mxu0 0.0
        %440 = vmatpush1.msra.mxu0 0.0
        %441 = vmatprep.subr.mxu0 0.0
        %442 = vmatpush1.msra.mxu0 0.0
        %443 = vmatprep.subr.mxu0 0.0
        %444 = vmatpush1.msra.mxu0 0.0
        %445 = vmatprep.subr.mxu0 0.0
        %446 = vmatpush1.msra.mxu0 0.0
        %447 = vmatprep.subr.mxu0 0.0
        %448 = vmatpush1.msra.mxu0 0.0
        %449 = vmatprep.subr.mxu0 0.0
        %450 = vmatpush1.msra.mxu0 0.0
        %451 = vmatprep.subr.mxu0 0.0
        %452 = vmatpush1.msra.mxu0 0.0
        %453 = vmatprep.subr.mxu0 0.0
        %454 = vmatpush1.msra.mxu0 0.0
        %455 = vmatprep.subr.mxu0 0.0
        %456 = vmatpush1.msra.mxu0 0.0
        %457 = vmatprep.subr.mxu0 0.0
        %458 = vmatpush1.msra.mxu0 0.0
        %459 = vmatprep.subr.mxu0 0.0
        %460 = vmatpush1.msra.mxu0 0.0
        %461 = vmatprep.subr.mxu0 0.0
        %462 = vmatpush1.msra.mxu0 0.0
        %463 = vmatprep.subr.mxu0 0.0
        %464 = vmatpush1.msra.mxu0 0.0
        %465 = vmatprep.subr.mxu0 0.0
        %466 = vmatpush1.msra.mxu0 0.0
        %467 = vmatprep.mubr.f32.mxu0 0.0
        %468 = vmatmul.mubr.f32.gmra.mrb[0].mxu0 %v376
        %v469 = vpop.f32.mrb[0].mxu0
        %v470 = vadd.f32 0.0, %v469
        %v471 = vpop.f32.mrb[0].mxu0
        %472 = vmatprep.mubr.f32.mxu0 0.0
        %473 = vmatmul.mubr.f32.gmra.mrb[0].mxu0 %v379
        %v474 = vpop.f32.mrb[0].mxu0
        %v475 = vadd.f32 0.0, %v474
        %v476 = vpop.f32.mrb[0].mxu0
        %477 = vmatprep.mubr.f32.mxu0 0.0
        %478 = vmatmul.mubr.f32.gmra.mrb[0].mxu0 %v382
        %v479 = vpop.f32.mrb[0].mxu0
        %v480 = vadd.f32 0.0, %v479
        %v481 = vpop.f32.mrb[0].mxu0
        %482 = vmatprep.mubr.f32.mxu0 0.0
        %483 = vmatmul.mubr.f32.gmra.mrb[0].mxu0 %v385
        %v484 = vpop.f32.mrb[0].mxu0
        %v485 = vadd.f32 0.0, %v484
        %v486 = vpop.f32.mrb[0].mxu0
        %487 = vmatprep.mubr.f32.mxu0 0.0
        %488 = vmatmul.mubr.f32.gmra.mrb[0].mxu0 %v388
        %v489 = vpop.f32.mrb[0].mxu0
        %v490 = vadd.f32 0.0, %v489
        %v491 = vpop.f32.mrb[0].mxu0
        %492 = vmatprep.mubr.f32.mxu0 0.0
        %493 = vmatmul.mubr.f32.gmra.mrb[0].mxu0 %v391
        %v494 = vpop.f32.mrb[0].mxu0
        %v495 = vadd.f32 0.0, %v494
        %v496 = vpop.f32.mrb[0].mxu0
        %497 = vmatprep.mubr.f32.mxu0 0.0
        %498 = vmatmul.mubr.f32.gmra.mrb[0].mxu0 %v394
        %v499 = vpop.f32.mrb[0].mxu0
        %v500 = vadd.f32 0.0, %v499
        %v501 = vpop.f32.mrb[0].mxu0
        %502 = vmatprep.mubr.f32.mxu0 0.0
        %503 = vmatmul.mubr.f32.gmra.mrb[0].mxu0 %v397
        %v504 = vpop.f32.mrb[0].mxu0
        %v505 = vadd.f32 0.0, %v504
        %v506 = vpop.f32.mrb[0].mxu0
        %507 = vdwg.mxu0
        %v509 = vlaneseq
        %v510 = vshrl.u32 %v509, 7
        %v511 = vsub.s32 0, %v510
        %v512 = vrot.slane %v364, %v511
        %v514 = vmul.f32 %v470, %v512
        %v515 = vmul.f32 %v475, %v512
        %v516 = vmul.f32 %v480, %v512
        %v517 = vmul.f32 %v485, %v512
        %v518 = vmul.f32 %v490, %v512
        %v519 = vmul.f32 %v495, %v512
        %v520 = vmul.f32 %v500, %v512
        %v521 = vmul.f32 %v505, %v512
        %v523 = vlaneseq
        %v524 = vshrl.u32 %v523, 7
        %v525 = vsub.s32 0, %v524
        %v526 = vrot.slane %v365, %v525
        %v528 = vadd.f32 %v514, %v526
        %v529 = vadd.f32 %v515, %v526
        %v530 = vadd.f32 %v516, %v526
        %v531 = vadd.f32 %v517, %v526
        %v532 = vadd.f32 %v518, %v526
        %v533 = vadd.f32 %v519, %v526
        %v534 = vadd.f32 %v520, %v526
        %v535 = vadd.f32 %v521, %v526
        %v536 = vmax.f32 %v528, 0.0
        %v537 = vmax.f32 %v529, 0.0
        %v538 = vmax.f32 %v530, 0.0
        %v539 = vmax.f32 %v531, 0.0
        %v540 = vmax.f32 %v532, 0.0
        %v541 = vmax.f32 %v533, 0.0
        %v542 = vmax.f32 %v534, 0.0
        %v543 = vmax.f32 %v535, 0.0
        %s544 = scalar_lea.vmem %s329, 64 [#allocation2]
        %v545 = vld [vmem:[%s544] sm:$0xff]
        %v546 = vld [vmem:[%s544 + $0x8] sm:$0xff]
        %v547 = vld [vmem:[%s544 + $0x10] sm:$0xff]
        %v548 = vld [vmem:[%s544 + $0x18] sm:$0xff]
        %v549 = vld [vmem:[%s544 + $0x20] sm:$0xff]
        %v550 = vld [vmem:[%s544 + $0x28] sm:$0xff]
        %v551 = vld [vmem:[%s544 + $0x30] sm:$0xff]
        %v552 = vld [vmem:[%s544 + $0x38] sm:$0xff]
        %v554 = vsel %vm374, %v545, 0
        %v557 = vsel %vm374, %v546, 0
        %v560 = vsel %vm374, %v547, 0
        %v563 = vsel %vm374, %v548, 0
        %v566 = vsel %vm374, %v549, 0
        %v569 = vsel %vm374, %v550, 0
        %v572 = vsel %vm374, %v551, 0
        %v575 = vsel %vm374, %v552, 0
        %577 = vmatprep.subr.mxu0 0.0
        %578 = vmatpush1.msra.mxu0 %v359
        %579 = vmatprep.subr.mxu0 0.0
        %580 = vmatpush1.msra.mxu0 %v360
        %581 = vmatprep.subr.mxu0 0.0
        %582 = vmatpush1.msra.mxu0 %v361
        %583 = vmatprep.subr.mxu0 0.0
        %584 = vmatpush1.msra.mxu0 %v362
        %585 = vmatprep.subr.mxu0 0.0
        %586 = vmatpush1.msra.mxu0 %v401
        %587 = vmatprep.subr.mxu0 0.0
        %588 = vmatpush1.msra.mxu0 0.0
        %589 = vmatprep.subr.mxu0 0.0
        %590 = vmatpush1.msra.mxu0 0.0
        %591 = vmatprep.subr.mxu0 0.0
        %592 = vmatpush1.msra.mxu0 0.0
        %593 = vmatprep.subr.mxu0 0.0
        %594 = vmatpush1.msra.mxu0 0.0
        %595 = vmatprep.subr.mxu0 0.0
        %596 = vmatpush1.msra.mxu0 0.0
        %597 = vmatprep.subr.mxu0 0.0
        %598 = vmatpush1.msra.mxu0 0.0
        %599 = vmatprep.subr.mxu0 0.0
        %600 = vmatpush1.msra.mxu0 0.0
        %601 = vmatprep.subr.mxu0 0.0
        %602 = vmatpush1.msra.mxu0 0.0
        %603 = vmatprep.subr.mxu0 0.0
        %604 = vmatpush1.msra.mxu0 0.0
        %605 = vmatprep.subr.mxu0 0.0
        %606 = vmatpush1.msra.mxu0 0.0
        %607 = vmatprep.subr.mxu0 0.0
        %608 = vmatpush1.msra.mxu0 0.0
        %609 = vmatprep.subr.mxu0 0.0
        %610 = vmatpush1.msra.mxu0 0.0
        %611 = vmatprep.subr.mxu0 0.0
        %612 = vmatpush1.msra.mxu0 0.0
        %613 = vmatprep.subr.mxu0 0.0
        %614 = vmatpush1.msra.mxu0 0.0
        %615 = vmatprep.subr.mxu0 0.0
        %616 = vmatpush1.msra.mxu0 0.0
        %617 = vmatprep.subr.mxu0 0.0
        %618 = vmatpush1.msra.mxu0 0.0
        %619 = vmatprep.subr.mxu0 0.0
        %620 = vmatpush1.msra.mxu0 0.0
        %621 = vmatprep.subr.mxu0 0.0
        %622 = vmatpush1.msra.mxu0 0.0
        %623 = vmatprep.subr.mxu0 0.0
        %624 = vmatpush1.msra.mxu0 0.0
        %625 = vmatprep.subr.mxu0 0.0
        %626 = vmatpush1.msra.mxu0 0.0
        %627 = vmatprep.subr.mxu0 0.0
        %628 = vmatpush1.msra.mxu0 0.0
        %629 = vmatprep.subr.mxu0 0.0
        %630 = vmatpush1.msra.mxu0 0.0
        %631 = vmatprep.subr.mxu0 0.0
        %632 = vmatpush1.msra.mxu0 0.0
        %633 = vmatprep.subr.mxu0 0.0
        %634 = vmatpush1.msra.mxu0 0.0
        %635 = vmatprep.subr.mxu0 0.0
        %636 = vmatpush1.msra.mxu0 0.0
        %637 = vmatprep.subr.mxu0 0.0
        %638 = vmatpush1.msra.mxu0 0.0
        %639 = vmatprep.subr.mxu0 0.0
        %640 = vmatpush1.msra.mxu0 0.0
        %641 = vmatprep.mubr.f32.mxu0 0.0
        %642 = vmatmul.mubr.f32.gmra.mrb[0].mxu0 %v554
        %v643 = vpop.f32.mrb[0].mxu0
        %v644 = vadd.f32 0.0, %v643
        %v645 = vpop.f32.mrb[0].mxu0
        %646 = vmatprep.mubr.f32.mxu0 0.0
        %647 = vmatmul.mubr.f32.gmra.mrb[0].mxu0 %v557
        %v648 = vpop.f32.mrb[0].mxu0
        %v649 = vadd.f32 0.0, %v648
        %v650 = vpop.f32.mrb[0].mxu0
        %651 = vmatprep.mubr.f32.mxu0 0.0
        %652 = vmatmul.mubr.f32.gmra.mrb[0].mxu0 %v560
        %v653 = vpop.f32.mrb[0].mxu0
        %v654 = vadd.f32 0.0, %v653
        %v655 = vpop.f32.mrb[0].mxu0
        %656 = vmatprep.mubr.f32.mxu0 0.0
        %657 = vmatmul.mubr.f32.gmra.mrb[0].mxu0 %v563
        %v658 = vpop.f32.mrb[0].mxu0
        %v659 = vadd.f32 0.0, %v658
        %v660 = vpop.f32.mrb[0].mxu0
        %661 = vmatprep.mubr.f32.mxu0 0.0
        %662 = vmatmul.mubr.f32.gmra.mrb[0].mxu0 %v566
        %v663 = vpop.f32.mrb[0].mxu0
        %v664 = vadd.f32 0.0, %v663
        %v665 = vpop.f32.mrb[0].mxu0
        %666 = vmatprep.mubr.f32.mxu0 0.0
        %667 = vmatmul.mubr.f32.gmra.mrb[0].mxu0 %v569
        %v668 = vpop.f32.mrb[0].mxu0
        %v669 = vadd.f32 0.0, %v668
        %v670 = vpop.f32.mrb[0].mxu0
        %671 = vmatprep.mubr.f32.mxu0 0.0
        %672 = vmatmul.mubr.f32.gmra.mrb[0].mxu0 %v572
        %v673 = vpop.f32.mrb[0].mxu0
        %v674 = vadd.f32 0.0, %v673
        %v675 = vpop.f32.mrb[0].mxu0
        %676 = vmatprep.mubr.f32.mxu0 0.0
        %677 = vmatmul.mubr.f32.gmra.mrb[0].mxu0 %v575
        %v678 = vpop.f32.mrb[0].mxu0
        %v679 = vadd.f32 0.0, %v678
        %v680 = vpop.f32.mrb[0].mxu0
        %681 = vdwg.mxu0
        %v682 = vmul.f32 %v644, %v512
        %v683 = vmul.f32 %v649, %v512
        %v684 = vmul.f32 %v654, %v512
        %v685 = vmul.f32 %v659, %v512
        %v686 = vmul.f32 %v664, %v512
        %v687 = vmul.f32 %v669, %v512
        %v688 = vmul.f32 %v674, %v512
        %v689 = vmul.f32 %v679, %v512
        %v690 = vadd.f32 %v682, %v526
        %v691 = vadd.f32 %v683, %v526
        %v692 = vadd.f32 %v684, %v526
        %v693 = vadd.f32 %v685, %v526
        %v694 = vadd.f32 %v686, %v526
        %v695 = vadd.f32 %v687, %v526
        %v696 = vadd.f32 %v688, %v526
        %v697 = vadd.f32 %v689, %v526
        %v698 = vmax.f32 %v690, 0.0
        %v699 = vmax.f32 %v691, 0.0
        %v700 = vmax.f32 %v692, 0.0
        %v701 = vmax.f32 %v693, 0.0
        %v702 = vmax.f32 %v694, 0.0
        %v703 = vmax.f32 %v695, 0.0
        %v704 = vmax.f32 %v696, 0.0
        %v705 = vmax.f32 %v697, 0.0
        %v706 = vmax.f32 %v536, %v698
        %v707 = vmax.f32 %v537, %v699
        %v708 = vmax.f32 %v538, %v700
        %v709 = vmax.f32 %v539, %v701
        %v710 = vmax.f32 %v540, %v702
        %v711 = vmax.f32 %v541, %v703
        %v712 = vmax.f32 %v542, %v704
        %v713 = vmax.f32 %v543, %v705
        %s714 = scalar_lea.vmem %s329, 128 [#allocation2]
        %v715 = vld [vmem:[%s714] sm:$0xff]
        %v716 = vld [vmem:[%s714 + $0x8] sm:$0xff]
        %v717 = vld [vmem:[%s714 + $0x10] sm:$0xff]
        %v718 = vld [vmem:[%s714 + $0x18] sm:$0xff]
        %v719 = vld [vmem:[%s714 + $0x20] sm:$0xff]
        %v720 = vld [vmem:[%s714 + $0x28] sm:$0xff]
        %v721 = vld [vmem:[%s714 + $0x30] sm:$0xff]
        %v722 = vld [vmem:[%s714 + $0x38] sm:$0xff]
        %v724 = vsel %vm374, %v715, 0
        %v727 = vsel %vm374, %v716, 0
        %v730 = vsel %vm374, %v717, 0
        %v733 = vsel %vm374, %v718, 0
        %v736 = vsel %vm374, %v719, 0
        %v739 = vsel %vm374, %v720, 0
        %v742 = vsel %vm374, %v721, 0
        %v745 = vsel %vm374, %v722, 0
        %747 = vmatprep.subr.mxu0 0.0
        %748 = vmatpush1.msra.mxu0 %v359
        %749 = vmatprep.subr.mxu0 0.0
        %750 = vmatpush1.msra.mxu0 %v360
        %751 = vmatprep.subr.mxu0 0.0
        %752 = vmatpush1.msra.mxu0 %v361
        %753 = vmatprep.subr.mxu0 0.0
        %754 = vmatpush1.msra.mxu0 %v362
        %755 = vmatprep.subr.mxu0 0.0
        %756 = vmatpush1.msra.mxu0 %v401
        %757 = vmatprep.subr.mxu0 0.0
        %758 = vmatpush1.msra.mxu0 0.0
        %759 = vmatprep.subr.mxu0 0.0
        %760 = vmatpush1.msra.mxu0 0.0
        %761 = vmatprep.subr.mxu0 0.0
        %762 = vmatpush1.msra.mxu0 0.0
        %763 = vmatprep.subr.mxu0 0.0
        %764 = vmatpush1.msra.mxu0 0.0
        %765 = vmatprep.subr.mxu0 0.0
        %766 = vmatpush1.msra.mxu0 0.0
        %767 = vmatprep.subr.mxu0 0.0
        %768 = vmatpush1.msra.mxu0 0.0
        %769 = vmatprep.subr.mxu0 0.0
        %770 = vmatpush1.msra.mxu0 0.0
        %771 = vmatprep.subr.mxu0 0.0
        %772 = vmatpush1.msra.mxu0 0.0
        %773 = vmatprep.subr.mxu0 0.0
        %774 = vmatpush1.msra.mxu0 0.0
        %775 = vmatprep.subr.mxu0 0.0
        %776 = vmatpush1.msra.mxu0 0.0
        %777 = vmatprep.subr.mxu0 0.0
        %778 = vmatpush1.msra.mxu0 0.0
        %779 = vmatprep.subr.mxu0 0.0
        %780 = vmatpush1.msra.mxu0 0.0
        %781 = vmatprep.subr.mxu0 0.0
        %782 = vmatpush1.msra.mxu0 0.0
        %783 = vmatprep.subr.mxu0 0.0
        %784 = vmatpush1.msra.mxu0 0.0
        %785 = vmatprep.subr.mxu0 0.0
        %786 = vmatpush1.msra.mxu0 0.0
        %787 = vmatprep.subr.mxu0 0.0
        %788 = vmatpush1.msra.mxu0 0.0
        %789 = vmatprep.subr.mxu0 0.0
        %790 = vmatpush1.msra.mxu0 0.0
        %791 = vmatprep.subr.mxu0 0.0
        %792 = vmatpush1.msra.mxu0 0.0
        %793 = vmatprep.subr.mxu0 0.0
        %794 = vmatpush1.msra.mxu0 0.0
        %795 = vmatprep.subr.mxu0 0.0
        %796 = vmatpush1.msra.mxu0 0.0
        %797 = vmatprep.subr.mxu0 0.0
        %798 = vmatpush1.msra.mxu0 0.0
        %799 = vmatprep.subr.mxu0 0.0
        %800 = vmatpush1.msra.mxu0 0.0
        %801 = vmatprep.subr.mxu0 0.0
        %802 = vmatpush1.msra.mxu0 0.0
        %803 = vmatprep.subr.mxu0 0.0
        %804 = vmatpush1.msra.mxu0 0.0
        %805 = vmatprep.subr.mxu0 0.0
        %806 = vmatpush1.msra.mxu0 0.0
        %807 = vmatprep.subr.mxu0 0.0
        %808 = vmatpush1.msra.mxu0 0.0
        %809 = vmatprep.subr.mxu0 0.0
        %810 = vmatpush1.msra.mxu0 0.0
        %811 = vmatprep.mubr.f32.mxu0 0.0
        %812 = vmatmul.mubr.f32.gmra.mrb[0].mxu0 %v724
        %v813 = vpop.f32.mrb[0].mxu0
        %v814 = vadd.f32 0.0, %v813
        %v815 = vpop.f32.mrb[0].mxu0
        %816 = vmatprep.mubr.f32.mxu0 0.0
        %817 = vmatmul.mubr.f32.gmra.mrb[0].mxu0 %v727
        %v818 = vpop.f32.mrb[0].mxu0
        %v819 = vadd.f32 0.0, %v818
        %v820 = vpop.f32.mrb[0].mxu0
        %821 = vmatprep.mubr.f32.mxu0 0.0
        %822 = vmatmul.mubr.f32.gmra.mrb[0].mxu0 %v730
        %v823 = vpop.f32.mrb[0].mxu0
        %v824 = vadd.f32 0.0, %v823
        %v825 = vpop.f32.mrb[0].mxu0
        %826 = vmatprep.mubr.f32.mxu0 0.0
        %827 = vmatmul.mubr.f32.gmra.mrb[0].mxu0 %v733
        %v828 = vpop.f32.mrb[0].mxu0
        %v829 = vadd.f32 0.0, %v828
        %v830 = vpop.f32.mrb[0].mxu0
        %831 = vmatprep.mubr.f32.mxu0 0.0
        %832 = vmatmul.mubr.f32.gmra.mrb[0].mxu0 %v736
        %v833 = vpop.f32.mrb[0].mxu0
        %v834 = vadd.f32 0.0, %v833
        %v835 = vpop.f32.mrb[0].mxu0
        %836 = vmatprep.mubr.f32.mxu0 0.0
        %837 = vmatmul.mubr.f32.gmra.mrb[0].mxu0 %v739
        %v838 = vpop.f32.mrb[0].mxu0
        %v839 = vadd.f32 0.0, %v838
        %v840 = vpop.f32.mrb[0].mxu0
        %841 = vmatprep.mubr.f32.mxu0 0.0
        %842 = vmatmul.mubr.f32.gmra.mrb[0].mxu0 %v742
        %v843 = vpop.f32.mrb[0].mxu0
        %v844 = vadd.f32 0.0, %v843
        %v845 = vpop.f32.mrb[0].mxu0
        %846 = vmatprep.mubr.f32.mxu0 0.0
        %847 = vmatmul.mubr.f32.gmra.mrb[0].mxu0 %v745
        %v848 = vpop.f32.mrb[0].mxu0
        %v849 = vadd.f32 0.0, %v848
        %v850 = vpop.f32.mrb[0].mxu0
        %851 = vdwg.mxu0
        %v852 = vmul.f32 %v814, %v512
        %v853 = vmul.f32 %v819, %v512
        %v854 = vmul.f32 %v824, %v512
        %v855 = vmul.f32 %v829, %v512
        %v856 = vmul.f32 %v834, %v512
        %v857 = vmul.f32 %v839, %v512
        %v858 = vmul.f32 %v844, %v512
        %v859 = vmul.f32 %v849, %v512
        %v860 = vadd.f32 %v852, %v526
        %v861 = vadd.f32 %v853, %v526
        %v862 = vadd.f32 %v854, %v526
        %v863 = vadd.f32 %v855, %v526
        %v864 = vadd.f32 %v856, %v526
        %v865 = vadd.f32 %v857, %v526
        %v866 = vadd.f32 %v858, %v526
        %v867 = vadd.f32 %v859, %v526
        %v868 = vmax.f32 %v860, 0.0
        %v869 = vmax.f32 %v861, 0.0
        %v870 = vmax.f32 %v862, 0.0
        %v871 = vmax.f32 %v863, 0.0
        %v872 = vmax.f32 %v864, 0.0
        %v873 = vmax.f32 %v865, 0.0
        %v874 = vmax.f32 %v866, 0.0
        %v875 = vmax.f32 %v867, 0.0
        %v876 = vmax.f32 %v706, %v868
        %v877 = vmax.f32 %v707, %v869
        %v878 = vmax.f32 %v708, %v870
        %v879 = vmax.f32 %v709, %v871
        %v880 = vmax.f32 %v710, %v872
        %v881 = vmax.f32 %v711, %v873
        %v882 = vmax.f32 %v712, %v874
        %v883 = vmax.f32 %v713, %v875
        %s884 = scalar_lea.vmem %s329, 192 [#allocation2]
        %v885 = vld [vmem:[%s884] sm:$0xff]
        %v886 = vld [vmem:[%s884 + $0x8] sm:$0xff]
        %v887 = vld [vmem:[%s884 + $0x10] sm:$0xff]
        %v888 = vld [vmem:[%s884 + $0x18] sm:$0xff]
        %v889 = vld [vmem:[%s884 + $0x20] sm:$0xff]
        %v890 = vld [vmem:[%s884 + $0x28] sm:$0xff]
        %v891 = vld [vmem:[%s884 + $0x30] sm:$0xff]
        %v892 = vld [vmem:[%s884 + $0x38] sm:$0xff]
        %v894 = vsel %vm374, %v885, 0
        %v897 = vsel %vm374, %v886, 0
        %v900 = vsel %vm374, %v887, 0
        %v903 = vsel %vm374, %v888, 0
        %v906 = vsel %vm374, %v889, 0
        %v909 = vsel %vm374, %v890, 0
        %v912 = vsel %vm374, %v891, 0
        %v915 = vsel %vm374, %v892, 0
        %917 = vmatprep.subr.mxu0 0.0
        %918 = vmatpush1.msra.mxu0 %v359
        %919 = vmatprep.subr.mxu0 0.0
        %920 = vmatpush1.msra.mxu0 %v360
        %921 = vmatprep.subr.mxu0 0.0
        %922 = vmatpush1.msra.mxu0 %v361
        %923 = vmatprep.subr.mxu0 0.0
        %924 = vmatpush1.msra.mxu0 %v362
        %925 = vmatprep.subr.mxu0 0.0
        %926 = vmatpush1.msra.mxu0 %v401
        %927 = vmatprep.subr.mxu0 0.0
        %928 = vmatpush1.msra.mxu0 0.0
        %929 = vmatprep.subr.mxu0 0.0
        %930 = vmatpush1.msra.mxu0 0.0
        %931 = vmatprep.subr.mxu0 0.0
        %932 = vmatpush1.msra.mxu0 0.0
        %933 = vmatprep.subr.mxu0 0.0
        %934 = vmatpush1.msra.mxu0 0.0
        %935 = vmatprep.subr.mxu0 0.0
        %936 = vmatpush1.msra.mxu0 0.0
        %937 = vmatprep.subr.mxu0 0.0
        %938 = vmatpush1.msra.mxu0 0.0
        %939 = vmatprep.subr.mxu0 0.0
        %940 = vmatpush1.msra.mxu0 0.0
        %941 = vmatprep.subr.mxu0 0.0
        %942 = vmatpush1.msra.mxu0 0.0
        %943 = vmatprep.subr.mxu0 0.0
        %944 = vmatpush1.msra.mxu0 0.0
        %945 = vmatprep.subr.mxu0 0.0
        %946 = vmatpush1.msra.mxu0 0.0
        %947 = vmatprep.subr.mxu0 0.0
        %948 = vmatpush1.msra.mxu0 0.0
        %949 = vmatprep.subr.mxu0 0.0
        %950 = vmatpush1.msra.mxu0 0.0
        %951 = vmatprep.subr.mxu0 0.0
        %952 = vmatpush1.msra.mxu0 0.0
        %953 = vmatprep.subr.mxu0 0.0
        %954 = vmatpush1.msra.mxu0 0.0
        %955 = vmatprep.subr.mxu0 0.0
        %956 = vmatpush1.msra.mxu0 0.0
        %957 = vmatprep.subr.mxu0 0.0
        %958 = vmatpush1.msra.mxu0 0.0
        %959 = vmatprep.subr.mxu0 0.0
        %960 = vmatpush1.msra.mxu0 0.0
        %961 = vmatprep.subr.mxu0 0.0
        %962 = vmatpush1.msra.mxu0 0.0
        %963 = vmatprep.subr.mxu0 0.0
        %964 = vmatpush1.msra.mxu0 0.0
        %965 = vmatprep.subr.mxu0 0.0
        %966 = vmatpush1.msra.mxu0 0.0
        %967 = vmatprep.subr.mxu0 0.0
        %968 = vmatpush1.msra.mxu0 0.0
        %969 = vmatprep.subr.mxu0 0.0
        %970 = vmatpush1.msra.mxu0 0.0
        %971 = vmatprep.subr.mxu0 0.0
        %972 = vmatpush1.msra.mxu0 0.0
        %973 = vmatprep.subr.mxu0 0.0
        %974 = vmatpush1.msra.mxu0 0.0
        %975 = vmatprep.subr.mxu0 0.0
        %976 = vmatpush1.msra.mxu0 0.0
        %977 = vmatprep.subr.mxu0 0.0
        %978 = vmatpush1.msra.mxu0 0.0
        %979 = vmatprep.subr.mxu0 0.0
        %980 = vmatpush1.msra.mxu0 0.0
        %981 = vmatprep.mubr.f32.mxu0 0.0
        %982 = vmatmul.mubr.f32.gmra.mrb[0].mxu0 %v894
        %v983 = vpop.f32.mrb[0].mxu0
        %v984 = vadd.f32 0.0, %v983
        %v985 = vpop.f32.mrb[0].mxu0
        %986 = vmatprep.mubr.f32.mxu0 0.0
        %987 = vmatmul.mubr.f32.gmra.mrb[0].mxu0 %v897
        %v988 = vpop.f32.mrb[0].mxu0
        %v989 = vadd.f32 0.0, %v988
        %v990 = vpop.f32.mrb[0].mxu0
        %991 = vmatprep.mubr.f32.mxu0 0.0
        %992 = vmatmul.mubr.f32.gmra.mrb[0].mxu0 %v900
        %v993 = vpop.f32.mrb[0].mxu0
        %v994 = vadd.f32 0.0, %v993
        %v995 = vpop.f32.mrb[0].mxu0
        %996 = vmatprep.mubr.f32.mxu0 0.0
        %997 = vmatmul.mubr.f32.gmra.mrb[0].mxu0 %v903
        %v998 = vpop.f32.mrb[0].mxu0
        %v999 = vadd.f32 0.0, %v998
        %v1000 = vpop.f32.mrb[0].mxu0
        %1001 = vmatprep.mubr.f32.mxu0 0.0
        %1002 = vmatmul.mubr.f32.gmra.mrb[0].mxu0 %v906
        %v1003 = vpop.f32.mrb[0].mxu0
        %v1004 = vadd.f32 0.0, %v1003
        %v1005 = vpop.f32.mrb[0].mxu0
        %1006 = vmatprep.mubr.f32.mxu0 0.0
        %1007 = vmatmul.mubr.f32.gmra.mrb[0].mxu0 %v909
        %v1008 = vpop.f32.mrb[0].mxu0
        %v1009 = vadd.f32 0.0, %v1008
        %v1010 = vpop.f32.mrb[0].mxu0
        %1011 = vmatprep.mubr.f32.mxu0 0.0
        %1012 = vmatmul.mubr.f32.gmra.mrb[0].mxu0 %v912
        %v1013 = vpop.f32.mrb[0].mxu0
        %v1014 = vadd.f32 0.0, %v1013
        %v1015 = vpop.f32.mrb[0].mxu0
        %1016 = vmatprep.mubr.f32.mxu0 0.0
        %1017 = vmatmul.mubr.f32.gmra.mrb[0].mxu0 %v915
        %v1018 = vpop.f32.mrb[0].mxu0
        %v1019 = vadd.f32 0.0, %v1018
        %v1020 = vpop.f32.mrb[0].mxu0
        %1021 = vdwg.mxu0
        %v1022 = vmul.f32 %v984, %v512
        %v1023 = vmul.f32 %v989, %v512
        %v1024 = vmul.f32 %v994, %v512
        %v1025 = vmul.f32 %v999, %v512
        %v1026 = vmul.f32 %v1004, %v512
        %v1027 = vmul.f32 %v1009, %v512
        %v1028 = vmul.f32 %v1014, %v512
        %v1029 = vmul.f32 %v1019, %v512
        %v1030 = vadd.f32 %v1022, %v526
        %v1031 = vadd.f32 %v1023, %v526
        %v1032 = vadd.f32 %v1024, %v526
        %v1033 = vadd.f32 %v1025, %v526
        %v1034 = vadd.f32 %v1026, %v526
        %v1035 = vadd.f32 %v1027, %v526
        %v1036 = vadd.f32 %v1028, %v526
        %v1037 = vadd.f32 %v1029, %v526
        %v1038 = vmax.f32 %v1030, 0.0
        %v1039 = vmax.f32 %v1031, 0.0
        %v1040 = vmax.f32 %v1032, 0.0
        %v1041 = vmax.f32 %v1033, 0.0
        %v1042 = vmax.f32 %v1034, 0.0
        %v1043 = vmax.f32 %v1035, 0.0
        %v1044 = vmax.f32 %v1036, 0.0
        %v1045 = vmax.f32 %v1037, 0.0
        %v1046 = vmax.f32 %v876, %v1038
        %v1047 = vmax.f32 %v877, %v1039
        %v1048 = vmax.f32 %v878, %v1040
        %v1049 = vmax.f32 %v879, %v1041
        %v1050 = vmax.f32 %v880, %v1042
        %v1051 = vmax.f32 %v881, %v1043
        %v1052 = vmax.f32 %v882, %v1044
        %v1053 = vmax.f32 %v883, %v1045
        %1054 = vst [vmem:[%s357] sm:$0xff] %v1046
        %1055 = vst [vmem:[%s357 + $0x8] sm:$0xff] %v1047
        %1056 = vst [vmem:[%s357 + $0x10] sm:$0xff] %v1048
        %1057 = vst [vmem:[%s357 + $0x18] sm:$0xff] %v1049
        %1058 = vst [vmem:[%s357 + $0x20] sm:$0xff] %v1050
        %1059 = vst [vmem:[%s357 + $0x28] sm:$0xff] %v1051
        %1060 = vst [vmem:[%s357 + $0x30] sm:$0xff] %v1052
        %1061 = vst [vmem:[%s357 + $0x38] sm:$0xff] %v1053
        %s1062 = smul.u32 8, %s15
        %p1063 = scmp.lt.s32.totalorder %s1062, 15
        %s1064 = scalar_select %p1063, %s1062, 15
        %s1065 = smul.addr %s1064, 8
        %s1066 = scalar_lea.vmem %s4, %s1065
        // Predicated region
        $region75: #{patch_conv_layer.3} parent=69 // pred_check
          %p1067 = pneg %p122
        $region76: #{patch_conv_layer.3} parent=69 // pred_check_branch
          %1069 = sbr.rel (%p1067) target = $region78
        $region77: #{patch_conv_layer.3} parent=69 // pred_region
          %s1070 = smul.u32 8, %s15
        $region78: #{patch_conv_layer.3} parent=69 // pred_fallthru
          _
      $region70: #{patch_conv_layer.3} parent=5 // pred_fallthru
        _
      %p1071 = scmp.le.s32.totalorder 2, %s10
      // Predicated region
      $region79: #{patch_conv_layer.3} parent=5 // pred_check
        %p1072 = pneg %p1071
      $region80: #{patch_conv_layer.3} parent=5 // pred_check_branch
        %1074 = sbr.rel (%p1072) target = $region82
      $region81: #{patch_conv_layer.3} parent=5 // pred_region
        %s1075 = ssub.s32 %s10, 2
        // Predicated region
        $region83: #{patch_conv_layer.3} parent=81 // pred_check
          %p1076 = pneg %p128
        $region84: #{patch_conv_layer.3} parent=81 // pred_check_branch
          %1078 = sbr.rel (%p1076) target = $region86
        $region85: #{patch_conv_layer.3} parent=81 // pred_region
          %s1079 = smul.u32 8, %s16
          %p1080 = scmp.lt.s32.totalorder %s1079, 15
          %s1081 = scalar_select %p1080, %s1079, 15
          %s1082 = smul.addr %s1081, 8
          %s1083 = scalar_lea.vmem %s4, %s1082
        $region86: #{patch_conv_layer.3} parent=81 // pred_fallthru
          _
      $region82: #{patch_conv_layer.3} parent=5 // pred_fallthru
        _
    $region6: #{patch_conv_layer.3} parent=1 // loop_footer
      %s14 = sadd.s32 1, %s10
    $region7: #{patch_conv_layer.3} parent=1 // loop_footer_branch
      %9 = sbr.rel target = $region3
    $region8: #{patch_conv_layer.3} parent=1 // loop_exit
      _

// kernel: patch_conv_layer.2
$region0: #{patch_conv_layer.2}
  #allocation0 [shape = 'u32[]', space=smem, size = 0x4, offset = 0x4, fixed_abs, tag = 'smem constant byte address 0x4 - core index']
  #allocation1 [shape = 'u32[144,128]{1,0:T(1,128)}', space=vmem, size = 0x12000, scoped, tag = 'internal scratch']
  %s0 = inlined_call_operand.vmem [shape: f32[4,128,36], index: 0, kind: input, shape index: {}]
  %s1 = inlined_call_operand.vmem [shape: f32[36,128], index: 1, kind: input, shape index: {}]
  %s2 = inlined_call_operand.vmem [shape: f32[1,128], index: 2, kind: output, shape index: {0}]
  %s3 = inlined_call_operand.vmem [shape: f32[1,128], index: 3, kind: output, shape index: {1}]
  %4 = xla_tuple %s2, %s3
  %s5 = sld [smem:[#allocation0]]
  $region91: #{patch_conv_layer.2} parent=0
    _
  %s7 = ssub.s32 1, %s5
  %s8 = scalar_select 0, %s7, %s5
  $region1: #{patch_conv_layer.2} parent=0
    #allocation2 [shape = 'u8[262144]{0}', space=vmem, size = 0x40000, scoped, tag = 'input window, operand 0']
    loop: start=0, step=1, limit=4
    $region2: #{patch_conv_layer.2} parent=1 // loop_pre_header
      _
    $region3: #{patch_conv_layer.2} parent=1 // loop_header
      %s10 = sphi 0, %s14
      %p11 = scmp.ge.s32.totalorder %s10, 4
      %s20 = sphi 0, %s22
      %s23 = sphi 0, %s20
      %s24 = sphi 0, %s23
      %s40 = sphi 0, %s24
      %s44 = sphi 0, %s44
      %s46 = sphi 0, %s44
      %s47 = sphi 0, %s46
      %s61 = sphi 0, %s47
      %s65 = sphi 0, %s65
      %s67 = sphi 0, %s65
      %s68 = sphi 0, %s67
      %s82 = sphi 0, %s68
      %s86 = sphi 0, %s86
      %s88 = sphi 0, %s86
      %s89 = sphi 0, %s88
      %s103 = sphi 0, %s89
    $region4: #{patch_conv_layer.2} parent=1 // loop_header_branch
      %13 = sbr.rel (%p11) target = $region8
    $region5: #{patch_conv_layer.2} parent=1 // loop_body
      %s15 = ssub.s32 %s10, 1
      %s16 = ssub.s32 %s10, 2
      %s17 = sadd.s32 %s10, 1
      %s18 = ssub.s32 %s10, %s17
      %p19 = scmp.eq.s32.totalorder %s18, 0
      %s21 = sadd.s32 %s20, 1
      %s22 = scalar_select %p19, %s20, %s21
      %p25 = pneg %p19
      %p26 = scmp.eq.s32.totalorder %s10, 1
      %p27 = por %p25, %p26
      %p28 = scmp.ne.s32.totalorder %s20, %s23
      %p29 = scmp.eq.s32.totalorder %s10, 0
      %p30 = por %p28, %p29
      %p31 = scmp.ne.s32.totalorder %s20, %s23
      %p32 = scmp.eq.s32.totalorder %s15, 1
      %p33 = por %p31, %p32
      %p34 = scmp.ne.s32.totalorder %s23, %s24
      %p35 = scmp.eq.s32.totalorder %s15, 0
      %p36 = por %p34, %p35
      %p37 = scmp.ne.s32.totalorder %s23, %s24
      %p38 = scmp.eq.s32.totalorder %s16, 1
      %p39 = por %p37, %p38
      %p41 = scmp.ne.s32.totalorder %s24, %s40
      %p42 = scmp.eq.s32.totalorder %s16, 0
      %p43 = por %p41, %p42
      %s45 = sadd.s32 %s44, 1
      %p48 = scmp.eq.s32.totalorder %s10, 1
      %p49 = scmp.ne.s32.totalorder %s44, %s46
      %p50 = scmp.eq.s32.totalorder %s10, 0
      %p51 = por %p49, %p50
      %p52 = scmp.ne.s32.totalorder %s44, %s46
      %p53 = scmp.eq.s32.totalorder %s15, 1
      %p54 = por %p52, %p53
      %p55 = scmp.ne.s32.totalorder %s46, %s47
      %p56 = scmp.eq.s32.totalorder %s15, 0
      %p57 = por %p55, %p56
      %p58 = scmp.ne.s32.totalorder %s46, %s47
      %p59 = scmp.eq.s32.totalorder %s16, 1
      %p60 = por %p58, %p59
      %p62 = scmp.ne.s32.totalorder %s47, %s61
      %p63 = scmp.eq.s32.totalorder %s16, 0
      %p64 = por %p62, %p63
      %s66 = sadd.s32 %s65, 1
      %p69 = scmp.eq.s32.totalorder %s10, 1
      %p70 = scmp.ne.s32.totalorder %s65, %s67
      %p71 = scmp.eq.s32.totalorder %s10, 0
      %p72 = por %p70, %p71
      %p73 = scmp.ne.s32.totalorder %s65, %s67
      %p74 = scmp.eq.s32.totalorder %s15, 1
      %p75 = por %p73, %p74
      %p76 = scmp.ne.s32.totalorder %s67, %s68
      %p77 = scmp.eq.s32.totalorder %s15, 0
      %p78 = por %p76, %p77
      %p79 = scmp.ne.s32.totalorder %s67, %s68
      %p80 = scmp.eq.s32.totalorder %s16, 1
      %p81 = por %p79, %p80
      %p83 = scmp.ne.s32.totalorder %s68, %s82
      %p84 = scmp.eq.s32.totalorder %s16, 0
      %p85 = por %p83, %p84
      %s87 = sadd.s32 %s86, 1
      %p90 = scmp.eq.s32.totalorder %s10, 1
      %p91 = scmp.ne.s32.totalorder %s86, %s88
      %p92 = scmp.eq.s32.totalorder %s10, 0
      %p93 = por %p91, %p92
      %p94 = scmp.ne.s32.totalorder %s86, %s88
      %p95 = scmp.eq.s32.totalorder %s15, 1
      %p96 = por %p94, %p95
      %p97 = scmp.ne.s32.totalorder %s88, %s89
      %p98 = scmp.eq.s32.totalorder %s15, 0
      %p99 = por %p97, %p98
      %p100 = scmp.ne.s32.totalorder %s88, %s89
      %p101 = scmp.eq.s32.totalorder %s16, 1
      %p102 = por %p100, %p101
      %p104 = scmp.ne.s32.totalorder %s89, %s103
      %p105 = scmp.eq.s32.totalorder %s16, 0
      %p106 = por %p104, %p105
      %p107 = scmp.le.s32.totalorder 1, %s10
      %p108 = scmp.lt.s32.totalorder %s10, 3
      %p109 = pnand %p107, %p108
      %p110 = pneg %p109
      // Predicated region
      $region9: #{patch_conv_layer.2} parent=5 // pred_check
        _
      $region10: #{patch_conv_layer.2} parent=5 // pred_check_branch
        %112 = sbr.rel (%p109) target = $region12
      $region11: #{patch_conv_layer.2} parent=5 // pred_region
        %s113 = ssub.s32 %s10, 1
        // Predicated region
        $region13: #{patch_conv_layer.2} parent=11 // pred_check
          %p114 = pneg %p57
        $region14: #{patch_conv_layer.2} parent=11 // pred_check_branch
          %116 = sbr.rel (%p114) target = $region16
        $region15: #{patch_conv_layer.2} parent=11 // pred_region
          _
        $region16: #{patch_conv_layer.2} parent=11 // pred_fallthru
          _
      $region12: #{patch_conv_layer.2} parent=5 // pred_fallthru
        _
      %p117 = scmp.lt.s32.totalorder %s10, 2
      // Predicated region
      $region17: #{patch_conv_layer.2} parent=5 // pred_check
        %p118 = pneg %p117
      $region18: #{patch_conv_layer.2} parent=5 // pred_check_branch
        %120 = sbr.rel (%p118) target = $region20
      $region19: #{patch_conv_layer.2} parent=5 // pred_region
        // Predicated region
        $region21: #{patch_conv_layer.2} parent=19 // pred_check
          %p121 = pneg %p30
        $region22: #{patch_conv_layer.2} parent=19 // pred_check_branch
          %123 = sbr.rel (%p121) target = $region24
        $region23: #{patch_conv_layer.2} parent=19 // pred_region
          %s124 = sand.u32 %s20, 1
          %s125 = sand.u32 %s20, 1
          %s126 = smul.addr %s125, 256
          %s127 = scalar_lea.vmem [#allocation2], %s126
          %s128 = smul.u32 8, %s10
          %s129 = smul.addr %s128, 8
          %s130 = scalar_lea.vmem %s0, %s129
          // Predicated region
          $region25: #{patch_conv_layer.2} parent=23 // pred_check
            _
          $region26: #{patch_conv_layer.2} parent=23 // pred_check_branch
            %132 = sbr.rel (0) target = $region28
          $region27: #{patch_conv_layer.2} parent=23 // pred_region
            // Predicated region
            $region29: #{patch_conv_layer.2} parent=27 // pred_check
              _
            $region30: #{patch_conv_layer.2} parent=27 // pred_check_branch
              %134 = sbr.rel (0) target = $region32
            $region31: #{patch_conv_layer.2} parent=27 // pred_region
              // Predicated region
              $region44: #{patch_conv_layer.2} parent=31 // pred_check
                _
              $region45: #{patch_conv_layer.2} parent=31 // pred_check_branch
                %211 = sbr.rel (0) target = $region47
              $region46: #{patch_conv_layer.2} parent=31 // pred_region
                loop: start=0, step=1, limit=1
                $region48: #{patch_conv_layer.2} parent=46 // loop_pre_header
                  _
                $region49: #{patch_conv_layer.2} parent=46 // loop_header
                  %s213 = sphi 0, %s217
                  %p214 = scmp.ge.s32.totalorder %s213, 1
                  %s218 = sphi %s130, %s130
                  %s219 = sphi %s127, %s127
                $region50: #{patch_conv_layer.2} parent=46 // loop_header_branch
                  %216 = sbr.rel (%p214) target = $region54
                $region51: #{patch_conv_layer.2} parent=46 // loop_body
                  %v220 = vld [vmem:[%s218] sm:$0xff]
                  %221 = vst [vmem:[%s219] sm:$0xff] %v220
                  %v222 = vld [vmem:[%s218 + $0x8] sm:$0xff]
                  %223 = vst [vmem:[%s219 + $0x8] sm:$0xff] %v222
                  %v224 = vld [vmem:[%s218 + $0x10] sm:$0xff]
                  %225 = vst [vmem:[%s219 + $0x10] sm:$0xff] %v224
                  %v226 = vld [vmem:[%s218 + $0x18] sm:$0xff]
                  %227 = vst [vmem:[%s219 + $0x18] sm:$0xff] %v226
                  %v228 = vld [vmem:[%s218 + $0x20] sm:$0xff]
                  %229 = vst [vmem:[%s219 + $0x20] sm:$0xff] %v228
                  %v230 = vld [vmem:[%s218 + $0x28] sm:$0xff]
                  %231 = vst [vmem:[%s219 + $0x28] sm:$0xff] %v230
                  %v232 = vld [vmem:[%s218 + $0x30] sm:$0xff]
                  %233 = vst [vmem:[%s219 + $0x30] sm:$0xff] %v232
                  %v234 = vld [vmem:[%s218 + $0x38] sm:$0xff]
                  %235 = vst [vmem:[%s219 + $0x38] sm:$0xff] %v234
                  %v236 = vld [vmem:[%s218 + $0x80] sm:$0xff]
                  %237 = vst [vmem:[%s219 + $0x40] sm:$0xff] %v236
                  %v238 = vld [vmem:[%s218 + $0x88] sm:$0xff]
                  %239 = vst [vmem:[%s219 + $0x48] sm:$0xff] %v238
                  %v240 = vld [vmem:[%s218 + $0x90] sm:$0xff]
                  %241 = vst [vmem:[%s219 + $0x50] sm:$0xff] %v240
                  %v242 = vld [vmem:[%s218 + $0x98] sm:$0xff]
                  %243 = vst [vmem:[%s219 + $0x58] sm:$0xff] %v242
                  %v244 = vld [vmem:[%s218 + $0xa0] sm:$0xff]
                  %245 = vst [vmem:[%s219 + $0x60] sm:$0xff] %v244
                  %v246 = vld [vmem:[%s218 + $0xa8] sm:$0xff]
                  %247 = vst [vmem:[%s219 + $0x68] sm:$0xff] %v246
                  %v248 = vld [vmem:[%s218 + $0xb0] sm:$0xff]
                  %249 = vst [vmem:[%s219 + $0x70] sm:$0xff] %v248
                  %v250 = vld [vmem:[%s218 + $0xb8] sm:$0xff]
                  %251 = vst [vmem:[%s219 + $0x78] sm:$0xff] %v250
                  %v252 = vld [vmem:[%s218 + $0x100] sm:$0xff]
                  %253 = vst [vmem:[%s219 + $0x80] sm:$0xff] %v252
                  %v254 = vld [vmem:[%s218 + $0x108] sm:$0xff]
                  %255 = vst [vmem:[%s219 + $0x88] sm:$0xff] %v254
                  %v256 = vld [vmem:[%s218 + $0x110] sm:$0xff]
                  %257 = vst [vmem:[%s219 + $0x90] sm:$0xff] %v256
                  %v258 = vld [vmem:[%s218 + $0x118] sm:$0xff]
                  %259 = vst [vmem:[%s219 + $0x98] sm:$0xff] %v258
                  %v260 = vld [vmem:[%s218 + $0x120] sm:$0xff]
                  %261 = vst [vmem:[%s219 + $0xa0] sm:$0xff] %v260
                  %v262 = vld [vmem:[%s218 + $0x128] sm:$0xff]
                  %263 = vst [vmem:[%s219 + $0xa8] sm:$0xff] %v262
                  %v264 = vld [vmem:[%s218 + $0x130] sm:$0xff]
                  %265 = vst [vmem:[%s219 + $0xb0] sm:$0xff] %v264
                  %v266 = vld [vmem:[%s218 + $0x138] sm:$0xff]
                  %267 = vst [vmem:[%s219 + $0xb8] sm:$0xff] %v266
                  %v268 = vld [vmem:[%s218 + $0x180] sm:$0xff]
                  %269 = vst [vmem:[%s219 + $0xc0] sm:$0xff] %v268
                  %v270 = vld [vmem:[%s218 + $0x188] sm:$0xff]
                  %271 = vst [vmem:[%s219 + $0xc8] sm:$0xff] %v270
                  %v272 = vld [vmem:[%s218 + $0x190] sm:$0xff]
                  %273 = vst [vmem:[%s219 + $0xd0] sm:$0xff] %v272
                  %v274 = vld [vmem:[%s218 + $0x198] sm:$0xff]
                  %275 = vst [vmem:[%s219 + $0xd8] sm:$0xff] %v274
                  %v276 = vld [vmem:[%s218 + $0x1a0] sm:$0xff]
                  %277 = vst [vmem:[%s219 + $0xe0] sm:$0xff] %v276
                  %v278 = vld [vmem:[%s218 + $0x1a8] sm:$0xff]
                  %279 = vst [vmem:[%s219 + $0xe8] sm:$0xff] %v278
                  %v280 = vld [vmem:[%s218 + $0x1b0] sm:$0xff]
                  %281 = vst [vmem:[%s219 + $0xf0] sm:$0xff] %v280
                  %v282 = vld [vmem:[%s218 + $0x1b8] sm:$0xff]
                  %283 = vst [vmem:[%s219 + $0xf8] sm:$0xff] %v282
                $region52: #{patch_conv_layer.2} parent=46 // loop_footer
                  %s217 = sadd.s32 1, %s213
                $region53: #{patch_conv_layer.2} parent=46 // loop_footer_branch
                  %212 = sbr.rel target = $region49
                $region54: #{patch_conv_layer.2} parent=46 // loop_exit
                  _
              $region47: #{patch_conv_layer.2} parent=31 // pred_fallthru
                _
              // Predicated region
              $region55: #{patch_conv_layer.2} parent=31 // pred_check
                _
              $region56: #{patch_conv_layer.2} parent=31 // pred_check_branch
                %285 = sbr.rel target = $region58
              $region57: #{patch_conv_layer.2} parent=31 // pred_region
                _
              $region58: #{patch_conv_layer.2} parent=31 // pred_fallthru
                _
            $region32: #{patch_conv_layer.2} parent=27 // pred_fallthru
              _
            // Predicated region
            $region33: #{patch_conv_layer.2} parent=27 // pred_check
              _
            $region34: #{patch_conv_layer.2} parent=27 // pred_check_branch
              %136 = sbr.rel target = $region36
            $region35: #{patch_conv_layer.2} parent=27 // pred_region
              loop: start=0, step=1, limit=1
              $region37: #{patch_conv_layer.2} parent=35 // loop_pre_header
                _
              $region38: #{patch_conv_layer.2} parent=35 // loop_header
                %s139 = sphi 0, %s143
                %p140 = scmp.ge.s32.totalorder %s139, 1
                %s144 = sphi %s130, %s130
                %s145 = sphi %s127, %s127
              $region39: #{patch_conv_layer.2} parent=35 // loop_header_branch
                %142 = sbr.rel (%p140) target = $region43
              $region40: #{patch_conv_layer.2} parent=35 // loop_body
                %v146 = vld [vmem:[%s144] sm:$0xff]
                %147 = vst [vmem:[%s145] sm:$0xff] %v146
                %v148 = vld [vmem:[%s144 + $0x8] sm:$0xff]
                %149 = vst [vmem:[%s145 + $0x8] sm:$0xff] %v148
                %v150 = vld [vmem:[%s144 + $0x10] sm:$0xff]
                %151 = vst [vmem:[%s145 + $0x10] sm:$0xff] %v150
                %v152 = vld [vmem:[%s144 + $0x18] sm:$0xff]
                %153 = vst [vmem:[%s145 + $0x18] sm:$0xff] %v152
                %v154 = vld [vmem:[%s144 + $0x20] sm:$0xff]
                %155 = vst [vmem:[%s145 + $0x20] sm:$0xff] %v154
                %v156 = vld [vmem:[%s144 + $0x28] sm:$0xff]
                %157 = vst [vmem:[%s145 + $0x28] sm:$0xff] %v156
                %v158 = vld [vmem:[%s144 + $0x30] sm:$0xff]
                %159 = vst [vmem:[%s145 + $0x30] sm:$0xff] %v158
                %v160 = vld [vmem:[%s144 + $0x38] sm:$0xff]
                %161 = vst [vmem:[%s145 + $0x38] sm:$0xff] %v160
                %v162 = vld [vmem:[%s144 + $0x80] sm:$0xff]
                %163 = vst [vmem:[%s145 + $0x40] sm:$0xff] %v162
                %v164 = vld [vmem:[%s144 + $0x88] sm:$0xff]
                %165 = vst [vmem:[%s145 + $0x48] sm:$0xff] %v164
                %v166 = vld [vmem:[%s144 + $0x90] sm:$0xff]
                %167 = vst [vmem:[%s145 + $0x50] sm:$0xff] %v166
                %v168 = vld [vmem:[%s144 + $0x98] sm:$0xff]
                %169 = vst [vmem:[%s145 + $0x58] sm:$0xff] %v168
                %v170 = vld [vmem:[%s144 + $0xa0] sm:$0xff]
                %171 = vst [vmem:[%s145 + $0x60] sm:$0xff] %v170
                %v172 = vld [vmem:[%s144 + $0xa8] sm:$0xff]
                %173 = vst [vmem:[%s145 + $0x68] sm:$0xff] %v172
                %v174 = vld [vmem:[%s144 + $0xb0] sm:$0xff]
                %175 = vst [vmem:[%s145 + $0x70] sm:$0xff] %v174
                %v176 = vld [vmem:[%s144 + $0xb8] sm:$0xff]
                %177 = vst [vmem:[%s145 + $0x78] sm:$0xff] %v176
                %v178 = vld [vmem:[%s144 + $0x100] sm:$0xff]
                %179 = vst [vmem:[%s145 + $0x80] sm:$0xff] %v178
                %v180 = vld [vmem:[%s144 + $0x108] sm:$0xff]
                %181 = vst [vmem:[%s145 + $0x88] sm:$0xff] %v180
                %v182 = vld [vmem:[%s144 + $0x110] sm:$0xff]
                %183 = vst [vmem:[%s145 + $0x90] sm:$0xff] %v182
                %v184 = vld [vmem:[%s144 + $0x118] sm:$0xff]
                %185 = vst [vmem:[%s145 + $0x98] sm:$0xff] %v184
                %v186 = vld [vmem:[%s144 + $0x120] sm:$0xff]
                %187 = vst [vmem:[%s145 + $0xa0] sm:$0xff] %v186
                %v188 = vld [vmem:[%s144 + $0x128] sm:$0xff]
                %189 = vst [vmem:[%s145 + $0xa8] sm:$0xff] %v188
                %v190 = vld [vmem:[%s144 + $0x130] sm:$0xff]
                %191 = vst [vmem:[%s145 + $0xb0] sm:$0xff] %v190
                %v192 = vld [vmem:[%s144 + $0x138] sm:$0xff]
                %193 = vst [vmem:[%s145 + $0xb8] sm:$0xff] %v192
                %v194 = vld [vmem:[%s144 + $0x180] sm:$0xff]
                %195 = vst [vmem:[%s145 + $0xc0] sm:$0xff] %v194
                %v196 = vld [vmem:[%s144 + $0x188] sm:$0xff]
                %197 = vst [vmem:[%s145 + $0xc8] sm:$0xff] %v196
                %v198 = vld [vmem:[%s144 + $0x190] sm:$0xff]
                %199 = vst [vmem:[%s145 + $0xd0] sm:$0xff] %v198
                %v200 = vld [vmem:[%s144 + $0x198] sm:$0xff]
                %201 = vst [vmem:[%s145 + $0xd8] sm:$0xff] %v200
                %v202 = vld [vmem:[%s144 + $0x1a0] sm:$0xff]
                %203 = vst [vmem:[%s145 + $0xe0] sm:$0xff] %v202
                %v204 = vld [vmem:[%s144 + $0x1a8] sm:$0xff]
                %205 = vst [vmem:[%s145 + $0xe8] sm:$0xff] %v204
                %v206 = vld [vmem:[%s144 + $0x1b0] sm:$0xff]
                %207 = vst [vmem:[%s145 + $0xf0] sm:$0xff] %v206
                %v208 = vld [vmem:[%s144 + $0x1b8] sm:$0xff]
                %209 = vst [vmem:[%s145 + $0xf8] sm:$0xff] %v208
              $region41: #{patch_conv_layer.2} parent=35 // loop_footer
                %s143 = sadd.s32 1, %s139
              $region42: #{patch_conv_layer.2} parent=35 // loop_footer_branch
                %138 = sbr.rel target = $region38
              $region43: #{patch_conv_layer.2} parent=35 // loop_exit
                _
            $region36: #{patch_conv_layer.2} parent=27 // pred_fallthru
              _
          $region28: #{patch_conv_layer.2} parent=23 // pred_fallthru
            _
          %286 = vnop
        $region24: #{patch_conv_layer.2} parent=19 // pred_fallthru
          _
      $region20: #{patch_conv_layer.2} parent=5 // pred_fallthru
        _
      %p287 = scmp.le.s32.totalorder 1, %s10
      %p288 = scmp.lt.s32.totalorder %s10, 3
      %p289 = pnand %p287, %p288
      %p290 = pneg %p289
      // Predicated region
      $region59: #{patch_conv_layer.2} parent=5 // pred_check
        _
      $region60: #{patch_conv_layer.2} parent=5 // pred_check_branch
        %292 = sbr.rel (%p289) target = $region62
      $region61: #{patch_conv_layer.2} parent=5 // pred_region
        %s293 = ssub.s32 %s10, 1
        %s294 = sand.u32 %s23, 1
        %s295 = sand.u32 %s23, 1
        %s296 = smul.addr %s295, 256
        %s297 = scalar_lea.vmem [#allocation2], %s296
        // Predicated region
        $region63: #{patch_conv_layer.2} parent=61 // pred_check
          %p298 = pneg %p36
        $region64: #{patch_conv_layer.2} parent=61 // pred_check_branch
          %300 = sbr.rel (%p298) target = $region66
        $region65: #{patch_conv_layer.2} parent=61 // pred_region
          _
        $region66: #{patch_conv_layer.2} parent=61 // pred_fallthru
          _
        %s301 = sand.u32 %s23, 1
        %s302 = sand.u32 %s23, 1
        %s303 = smul.addr %s302, 256
        %s304 = scalar_lea.vmem [#allocation2], %s303
        %p305 = pneg %p36
        %p306 = pneg %p33
        %p307 = pneg %p57
        %p308 = pneg %p54
        %p309 = pneg %p78
        %p310 = pneg %p75
        %p311 = pneg %p99
        %p312 = pneg %p96
        %s313 = smul.u32 8, %s15
        %p314 = scmp.eq.s32.totalorder %s15, 0
        // Predicated region
        $region67: #{patch_conv_layer.2} parent=61 // pred_check
          %p315 = pneg %p314
        $region68: #{patch_conv_layer.2} parent=61 // pred_check_branch
          %317 = sbr.rel (%p315) target = $region70
        $region69: #{patch_conv_layer.2} parent=61 // pred_region
          %318 = vst [vmem:[%s2] sm:$0x1] 0.0
          %319 = vst [vmem:[%s3] sm:$0x1] 0.0
        $region70: #{patch_conv_layer.2} parent=61 // pred_fallthru
          _
        %v320 = vld [vmem:[%s1] sm:$0xff]
        %v321 = vld [vmem:[%s1 + $0x8] sm:$0xff]
        %v322 = vld [vmem:[%s1 + $0x10] sm:$0xff]
        %v323 = vld [vmem:[%s1 + $0x18] sm:$0xff]
        %v324 = vld [vmem:[%s1 + $0x20] sm:$0xf]
        %v325 = vld [vmem:[%s297] sm:$0xff]
        %v326 = vld [vmem:[%s297 + $0x8] sm:$0xff]
        %v327 = vld [vmem:[%s297 + $0x10] sm:$0xff]
        %v328 = vld [vmem:[%s297 + $0x18] sm:$0xff]
        %v329 = vld [vmem:[%s297 + $0x20] sm:$0xff]
        %v330 = vld [vmem:[%s297 + $0x28] sm:$0xff]
        %v331 = vld [vmem:[%s297 + $0x30] sm:$0xff]
        %v332 = vld [vmem:[%s297 + $0x38] sm:$0xff]
        %vm333 = vcmask 293888
        %v335 = vsel %vm333, %v325, 0
        %v338 = vsel %vm333, %v326, 0
        %v341 = vsel %vm333, %v327, 0
        %v344 = vsel %vm333, %v328, 0
        %v347 = vsel %vm333, %v329, 0
        %v350 = vsel %vm333, %v330, 0
        %v353 = vsel %vm333, %v331, 0
        %v356 = vsel %vm333, %v332, 0
        %vm358 = vcmask 1043456
        %v360 = vsel %vm358, %v324, 0
        %362 = vmatprep.subr.mxu0 0.0
        %363 = vmatpush1.msra.mxu0 %v320
        %364 = vmatprep.subr.mxu0 0.0
        %365 = vmatpush1.msra.mxu0 %v321
        %366 = vmatprep.subr.mxu0 0.0
        %367 = vmatpush1.msra.mxu0 %v322
        %368 = vmatprep.subr.mxu0 0.0
        %369 = vmatpush1.msra.mxu0 %v323
        %370 = vmatprep.subr.mxu0 0.0
        %371 = vmatpush1.msra.mxu0 %v360
        %372 = vmatprep.subr.mxu0 0.0
        %373 = vmatpush1.msra.mxu0 0.0
        %374 = vmatprep.subr.mxu0 0.0
        %375 = vmatpush1.msra.mxu0 0.0
        %376 = vmatprep.subr.mxu0 0.0
        %377 = vmatpush1.msra.mxu0 0.0
        %378 = vmatprep.subr.mxu0 0.0
        %379 = vmatpush1.msra.mxu0 0.0
        %380 = vmatprep.subr.mxu0 0.0
        %381 = vmatpush1.msra.mxu0 0.0
        %382 = vmatprep.subr.mxu0 0.0
        %383 = vmatpush1.msra.mxu0 0.0
        %384 = vmatprep.subr.mxu0 0.0
        %385 = vmatpush1.msra.mxu0 0.0
        %386 = vmatprep.subr.mxu0 0.0
        %387 = vmatpush1.msra.mxu0 0.0
        %388 = vmatprep.subr.mxu0 0.0
        %389 = vmatpush1.msra.mxu0 0.0
        %390 = vmatprep.subr.mxu0 0.0
        %391 = vmatpush1.msra.mxu0 0.0
        %392 = vmatprep.subr.mxu0 0.0
        %393 = vmatpush1.msra.mxu0 0.0
        %394 = vmatprep.subr.mxu0 0.0
        %395 = vmatpush1.msra.mxu0 0.0
        %396 = vmatprep.subr.mxu0 0.0
        %397 = vmatpush1.msra.mxu0 0.0
        %398 = vmatprep.subr.mxu0 0.0
        %399 = vmatpush1.msra.mxu0 0.0
        %400 = vmatprep.subr.mxu0 0.0
        %401 = vmatpush1.msra.mxu0 0.0
        %402 = vmatprep.subr.mxu0 0.0
        %403 = vmatpush1.msra.mxu0 0.0
        %404 = vmatprep.subr.mxu0 0.0
        %405 = vmatpush1.msra.mxu0 0.0
        %406 = vmatprep.subr.mxu0 0.0
        %407 = vmatpush1.msra.mxu0 0.0
        %408 = vmatprep.subr.mxu0 0.0
        %409 = vmatpush1.msra.mxu0 0.0
        %410 = vmatprep.subr.mxu0 0.0
        %411 = vmatpush1.msra.mxu0 0.0
        %412 = vmatprep.subr.mxu0 0.0
        %413 = vmatpush1.msra.mxu0 0.0
        %414 = vmatprep.subr.mxu0 0.0
        %415 = vmatpush1.msra.mxu0 0.0
        %416 = vmatprep.subr.mxu0 0.0
        %417 = vmatpush1.msra.mxu0 0.0
        %418 = vmatprep.subr.mxu0 0.0
        %419 = vmatpush1.msra.mxu0 0.0
        %420 = vmatprep.subr.mxu0 0.0
        %421 = vmatpush1.msra.mxu0 0.0
        %422 = vmatprep.subr.mxu0 0.0
        %423 = vmatpush1.msra.mxu0 0.0
        %424 = vmatprep.subr.mxu0 0.0
        %425 = vmatpush1.msra.mxu0 0.0
        %426 = vmatprep.mubr.f32.mxu0 0.0
        %427 = vmatmul.mubr.f32.gmra.mrb[0].mxu0 %v335
        %v428 = vpop.f32.mrb[0].mxu0
        %v429 = vadd.f32 0.0, %v428
        %v430 = vpop.f32.mrb[0].mxu0
        %431 = vmatprep.mubr.f32.mxu0 0.0
        %432 = vmatmul.mubr.f32.gmra.mrb[0].mxu0 %v338
        %v433 = vpop.f32.mrb[0].mxu0
        %v434 = vadd.f32 0.0, %v433
        %v435 = vpop.f32.mrb[0].mxu0
        %436 = vmatprep.mubr.f32.mxu0 0.0
        %437 = vmatmul.mubr.f32.gmra.mrb[0].mxu0 %v341
        %v438 = vpop.f32.mrb[0].mxu0
        %v439 = vadd.f32 0.0, %v438
        %v440 = vpop.f32.mrb[0].mxu0
        %441 = vmatprep.mubr.f32.mxu0 0.0
        %442 = vmatmul.mubr.f32.gmra.mrb[0].mxu0 %v344
        %v443 = vpop.f32.mrb[0].mxu0
        %v444 = vadd.f32 0.0, %v443
        %v445 = vpop.f32.mrb[0].mxu0
        %446 = vmatprep.mubr.f32.mxu0 0.0
        %447 = vmatmul.mubr.f32.gmra.mrb[0].mxu0 %v347
        %v448 = vpop.f32.mrb[0].mxu0
        %v449 = vadd.f32 0.0, %v448
        %v450 = vpop.f32.mrb[0].mxu0
        %451 = vmatprep.mubr.f32.mxu0 0.0
        %452 = vmatmul.mubr.f32.gmra.mrb[0].mxu0 %v350
        %v453 = vpop.f32.mrb[0].mxu0
        %v454 = vadd.f32 0.0, %v453
        %v455 = vpop.f32.mrb[0].mxu0
        %456 = vmatprep.mubr.f32.mxu0 0.0
        %457 = vmatmul.mubr.f32.gmra.mrb[0].mxu0 %v353
        %v458 = vpop.f32.mrb[0].mxu0
        %v459 = vadd.f32 0.0, %v458
        %v460 = vpop.f32.mrb[0].mxu0
        %461 = vmatprep.mubr.f32.mxu0 0.0
        %462 = vmatmul.mubr.f32.gmra.mrb[0].mxu0 %v356
        %v463 = vpop.f32.mrb[0].mxu0
        %v464 = vadd.f32 0.0, %v463
        %v465 = vpop.f32.mrb[0].mxu0
        %466 = vdwg.mxu0
        %v467 = vadd.f32 %v429, %v434
        %v468 = vadd.f32 %v467, %v439
        %v469 = vadd.f32 %v468, %v444
        %v470 = vadd.f32 %v469, %v449
        %v471 = vadd.f32 %v470, %v454
        %v472 = vadd.f32 %v471, %v459
        %v473 = vadd.f32 %v472, %v464
        %v474 = vrot.slane %v473, 4
        %v475 = vadd.f32 %v473, %v474
        %v476 = vrot.slane %v475, 2
        %v477 = vadd.f32 %v475, %v476
        %v478 = vrot.slane %v477, 1
        %v479 = vadd.f32 %v477, %v478
        %v480 = vadd.f32 %v479, 0.0
        %v481 = vmul.f32 %v429, %v429
        %v482 = vmul.f32 %v434, %v434
        %v483 = vmul.f32 %v439, %v439
        %v484 = vmul.f32 %v444, %v444
        %v485 = vmul.f32 %v449, %v449
        %v486 = vmul.f32 %v454, %v454
        %v487 = vmul.f32 %v459, %v459
        %v488 = vmul.f32 %v464, %v464
        %v489 = vadd.f32 %v481, %v482
        %v490 = vadd.f32 %v489, %v483
        %v491 = vadd.f32 %v490, %v484
        %v492 = vadd.f32 %v491, %v485
        %v493 = vadd.f32 %v492, %v486
        %v494 = vadd.f32 %v493, %v487
        %v495 = vadd.f32 %v494, %v488
        %v496 = vrot.slane %v495, 4
        %v497 = vadd.f32 %v495, %v496
        %v498 = vrot.slane %v497, 2
        %v499 = vadd.f32 %v497, %v498
        %v500 = vrot.slane %v499, 1
        %v501 = vadd.f32 %v499, %v500
        %v502 = vadd.f32 %v501, 0.0
        %s503 = scalar_lea.vmem %s297, 64 [#allocation2]
        %v504 = vld [vmem:[%s503] sm:$0xff]
        %v505 = vld [vmem:[%s503 + $0x8] sm:$0xff]
        %v506 = vld [vmem:[%s503 + $0x10] sm:$0xff]
        %v507 = vld [vmem:[%s503 + $0x18] sm:$0xff]
        %v508 = vld [vmem:[%s503 + $0x20] sm:$0xff]
        %v509 = vld [vmem:[%s503 + $0x28] sm:$0xff]
        %v510 = vld [vmem:[%s503 + $0x30] sm:$0xff]
        %v511 = vld [vmem:[%s503 + $0x38] sm:$0xff]
        %v513 = vsel %vm333, %v504, 0
        %v516 = vsel %vm333, %v505, 0
        %v519 = vsel %vm333, %v506, 0
        %v522 = vsel %vm333, %v507, 0
        %v525 = vsel %vm333, %v508, 0
        %v528 = vsel %vm333, %v509, 0
        %v531 = vsel %vm333, %v510, 0
        %v534 = vsel %vm333, %v511, 0
        %536 = vmatprep.subr.mxu0 0.0
        %537 = vmatpush1.msra.mxu0 %v320
        %538 = vmatprep.subr.mxu0 0.0
        %539 = vmatpush1.msra.mxu0 %v321
        %540 = vmatprep.subr.mxu0 0.0
        %541 = vmatpush1.msra.mxu0 %v322
        %542 = vmatprep.subr.mxu0 0.0
        %543 = vmatpush1.msra.mxu0 %v323
        %544 = vmatprep.subr.mxu0 0.0
        %545 = vmatpush1.msra.mxu0 %v360
        %546 = vmatprep.subr.mxu0 0.0
        %547 = vmatpush1.msra.mxu0 0.0
        %548 = vmatprep.subr.mxu0 0.0
        %549 = vmatpush1.msra.mxu0 0.0
        %550 = vmatprep.subr.mxu0 0.0
        %551 = vmatpush1.msra.mxu0 0.0
        %552 = vmatprep.subr.mxu0 0.0
        %553 = vmatpush1.msra.mxu0 0.0
        %554 = vmatprep.subr.mxu0 0.0
        %555 = vmatpush1.msra.mxu0 0.0
        %556 = vmatprep.subr.mxu0 0.0
        %557 = vmatpush1.msra.mxu0 0.0
        %558 = vmatprep.subr.mxu0 0.0
        %559 = vmatpush1.msra.mxu0 0.0
        %560 = vmatprep.subr.mxu0 0.0
        %561 = vmatpush1.msra.mxu0 0.0
        %562 = vmatprep.subr.mxu0 0.0
        %563 = vmatpush1.msra.mxu0 0.0
        %564 = vmatprep.subr.mxu0 0.0
        %565 = vmatpush1.msra.mxu0 0.0
        %566 = vmatprep.subr.mxu0 0.0
        %567 = vmatpush1.msra.mxu0 0.0
        %568 = vmatprep.subr.mxu0 0.0
        %569 = vmatpush1.msra.mxu0 0.0
        %570 = vmatprep.subr.mxu0 0.0
        %571 = vmatpush1.msra.mxu0 0.0
        %572 = vmatprep.subr.mxu0 0.0
        %573 = vmatpush1.msra.mxu0 0.0
        %574 = vmatprep.subr.mxu0 0.0
        %575 = vmatpush1.msra.mxu0 0.0
        %576 = vmatprep.subr.mxu0 0.0
        %577 = vmatpush1.msra.mxu0 0.0
        %578 = vmatprep.subr.mxu0 0.0
        %579 = vmatpush1.msra.mxu0 0.0
        %580 = vmatprep.subr.mxu0 0.0
        %581 = vmatpush1.msra.mxu0 0.0
        %582 = vmatprep.subr.mxu0 0.0
        %583 = vmatpush1.msra.mxu0 0.0
        %584 = vmatprep.subr.mxu0 0.0
        %585 = vmatpush1.msra.mxu0 0.0
        %586 = vmatprep.subr.mxu0 0.0
        %587 = vmatpush1.msra.mxu0 0.0
        %588 = vmatprep.subr.mxu0 0.0
        %589 = vmatpush1.msra.mxu0 0.0
        %590 = vmatprep.subr.mxu0 0.0
        %591 = vmatpush1.msra.mxu0 0.0
        %592 = vmatprep.subr.mxu0 0.0
        %593 = vmatpush1.msra.mxu0 0.0
        %594 = vmatprep.subr.mxu0 0.0
        %595 = vmatpush1.msra.mxu0 0.0
        %596 = vmatprep.subr.mxu0 0.0
        %597 = vmatpush1.msra.mxu0 0.0
        %598 = vmatprep.subr.mxu0 0.0
        %599 = vmatpush1.msra.mxu0 0.0
        %600 = vmatprep.mubr.f32.mxu0 0.0
        %601 = vmatmul.mubr.f32.gmra.mrb[0].mxu0 %v513
        %v602 = vpop.f32.mrb[0].mxu0
        %v603 = vadd.f32 0.0, %v602
        %v604 = vpop.f32.mrb[0].mxu0
        %605 = vmatprep.mubr.f32.mxu0 0.0
        %606 = vmatmul.mubr.f32.gmra.mrb[0].mxu0 %v516
        %v607 = vpop.f32.mrb[0].mxu0
        %v608 = vadd.f32 0.0, %v607
        %v609 = vpop.f32.mrb[0].mxu0
        %610 = vmatprep.mubr.f32.mxu0 0.0
        %611 = vmatmul.mubr.f32.gmra.mrb[0].mxu0 %v519
        %v612 = vpop.f32.mrb[0].mxu0
        %v613 = vadd.f32 0.0, %v612
        %v614 = vpop.f32.mrb[0].mxu0
        %615 = vmatprep.mubr.f32.mxu0 0.0
        %616 = vmatmul.mubr.f32.gmra.mrb[0].mxu0 %v522
        %v617 = vpop.f32.mrb[0].mxu0
        %v618 = vadd.f32 0.0, %v617
        %v619 = vpop.f32.mrb[0].mxu0
        %620 = vmatprep.mubr.f32.mxu0 0.0
        %621 = vmatmul.mubr.f32.gmra.mrb[0].mxu0 %v525
        %v622 = vpop.f32.mrb[0].mxu0
        %v623 = vadd.f32 0.0, %v622
        %v624 = vpop.f32.mrb[0].mxu0
        %625 = vmatprep.mubr.f32.mxu0 0.0
        %626 = vmatmul.mubr.f32.gmra.mrb[0].mxu0 %v528
        %v627 = vpop.f32.mrb[0].mxu0
        %v628 = vadd.f32 0.0, %v627
        %v629 = vpop.f32.mrb[0].mxu0
        %630 = vmatprep.mubr.f32.mxu0 0.0
        %631 = vmatmul.mubr.f32.gmra.mrb[0].mxu0 %v531
        %v632 = vpop.f32.mrb[0].mxu0
        %v633 = vadd.f32 0.0, %v632
        %v634 = vpop.f32.mrb[0].mxu0
        %635 = vmatprep.mubr.f32.mxu0 0.0
        %636 = vmatmul.mubr.f32.gmra.mrb[0].mxu0 %v534
        %v637 = vpop.f32.mrb[0].mxu0
        %v638 = vadd.f32 0.0, %v637
        %v639 = vpop.f32.mrb[0].mxu0
        %640 = vdwg.mxu0
        %v641 = vadd.f32 %v603, %v608
        %v642 = vadd.f32 %v641, %v613
        %v643 = vadd.f32 %v642, %v618
        %v644 = vadd.f32 %v643, %v623
        %v645 = vadd.f32 %v644, %v628
        %v646 = vadd.f32 %v645, %v633
        %v647 = vadd.f32 %v646, %v638
        %v648 = vrot.slane %v647, 4
        %v649 = vadd.f32 %v647, %v648
        %v650 = vrot.slane %v649, 2
        %v651 = vadd.f32 %v649, %v650
        %v652 = vrot.slane %v651, 1
        %v653 = vadd.f32 %v651, %v652
        %v654 = vadd.f32 %v480, %v653
        %v655 = vmul.f32 %v603, %v603
        %v656 = vmul.f32 %v608, %v608
        %v657 = vmul.f32 %v613, %v613
        %v658 = vmul.f32 %v618, %v618
        %v659 = vmul.f32 %v623, %v623
        %v660 = vmul.f32 %v628, %v628
        %v661 = vmul.f32 %v633, %v633
        %v662 = vmul.f32 %v638, %v638
        %v663 = vadd.f32 %v655, %v656
        %v664 = vadd.f32 %v663, %v657
        %v665 = vadd.f32 %v664, %v658
        %v666 = vadd.f32 %v665, %v659
        %v667 = vadd.f32 %v666, %v660
        %v668 = vadd.f32 %v667, %v661
        %v669 = vadd.f32 %v668, %v662
        %v670 = vrot.slane %v669, 4
        %v671 = vadd.f32 %v669, %v670
        %v672 = vrot.slane %v671, 2
        %v673 = vadd.f32 %v671, %v672
        %v674 = vrot.slane %v673, 1
        %v675 = vadd.f32 %v673, %v674
        %v676 = vadd.f32 %v502, %v675
        %s677 = scalar_lea.vmem %s297, 128 [#allocation2]
        %v678 = vld [vmem:[%s677] sm:$0xff]
        %v679 = vld [vmem:[%s677 + $0x8] sm:$0xff]
        %v680 = vld [vmem:[%s677 + $0x10] sm:$0xff]
        %v681 = vld [vmem:[%s677 + $0x18] sm:$0xff]
        %v682 = vld [vmem:[%s677 + $0x20] sm:$0xff]
        %v683 = vld [vmem:[%s677 + $0x28] sm:$0xff]
        %v684 = vld [vmem:[%s677 + $0x30] sm:$0xff]
        %v685 = vld [vmem:[%s677 + $0x38] sm:$0xff]
        %v687 = vsel %vm333, %v678, 0
        %v690 = vsel %vm333, %v679, 0
        %v693 = vsel %vm333, %v680, 0
        %v696 = vsel %vm333, %v681, 0
        %v699 = vsel %vm333, %v682, 0
        %v702 = vsel %vm333, %v683, 0
        %v705 = vsel %vm333, %v684, 0
        %v708 = vsel %vm333, %v685, 0
        %710 = vmatprep.subr.mxu0 0.0
        %711 = vmatpush1.msra.mxu0 %v320
        %712 = vmatprep.subr.mxu0 0.0
        %713 = vmatpush1.msra.mxu0 %v321
        %714 = vmatprep.subr.mxu0 0.0
        %715 = vmatpush1.msra.mxu0 %v322
        %716 = vmatprep.subr.mxu0 0.0
        %717 = vmatpush1.msra.mxu0 %v323
        %718 = vmatprep.subr.mxu0 0.0
        %719 = vmatpush1.msra.mxu0 %v360
        %720 = vmatprep.subr.mxu0 0.0
        %721 = vmatpush1.msra.mxu0 0.0
        %722 = vmatprep.subr.mxu0 0.0
        %723 = vmatpush1.msra.mxu0 0.0
        %724 = vmatprep.subr.mxu0 0.0
        %725 = vmatpush1.msra.mxu0 0.0
        %726 = vmatprep.subr.mxu0 0.0
        %727 = vmatpush1.msra.mxu0 0.0
        %728 = vmatprep.subr.mxu0 0.0
        %729 = vmatpush1.msra.mxu0 0.0
        %730 = vmatprep.subr.mxu0 0.0
        %731 = vmatpush1.msra.mxu0 0.0
        %732 = vmatprep.subr.mxu0 0.0
        %733 = vmatpush1.msra.mxu0 0.0
        %734 = vmatprep.subr.mxu0 0.0
        %735 = vmatpush1.msra.mxu0 0.0
        %736 = vmatprep.subr.mxu0 0.0
        %737 = vmatpush1.msra.mxu0 0.0
        %738 = vmatprep.subr.mxu0 0.0
        %739 = vmatpush1.msra.mxu0 0.0
        %740 = vmatprep.subr.mxu0 0.0
        %741 = vmatpush1.msra.mxu0 0.0
        %742 = vmatprep.subr.mxu0 0.0
        %743 = vmatpush1.msra.mxu0 0.0
        %744 = vmatprep.subr.mxu0 0.0
        %745 = vmatpush1.msra.mxu0 0.0
        %746 = vmatprep.subr.mxu0 0.0
        %747 = vmatpush1.msra.mxu0 0.0
        %748 = vmatprep.subr.mxu0 0.0
        %749 = vmatpush1.msra.mxu0 0.0
        %750 = vmatprep.subr.mxu0 0.0
        %751 = vmatpush1.msra.mxu0 0.0
        %752 = vmatprep.subr.mxu0 0.0
        %753 = vmatpush1.msra.mxu0 0.0
        %754 = vmatprep.subr.mxu0 0.0
        %755 = vmatpush1.msra.mxu0 0.0
        %756 = vmatprep.subr.mxu0 0.0
        %757 = vmatpush1.msra.mxu0 0.0
        %758 = vmatprep.subr.mxu0 0.0
        %759 = vmatpush1.msra.mxu0 0.0
        %760 = vmatprep.subr.mxu0 0.0
        %761 = vmatpush1.msra.mxu0 0.0
        %762 = vmatprep.subr.mxu0 0.0
        %763 = vmatpush1.msra.mxu0 0.0
        %764 = vmatprep.subr.mxu0 0.0
        %765 = vmatpush1.msra.mxu0 0.0
        %766 = vmatprep.subr.mxu0 0.0
        %767 = vmatpush1.msra.mxu0 0.0
        %768 = vmatprep.subr.mxu0 0.0
        %769 = vmatpush1.msra.mxu0 0.0
        %770 = vmatprep.subr.mxu0 0.0
        %771 = vmatpush1.msra.mxu0 0.0
        %772 = vmatprep.subr.mxu0 0.0
        %773 = vmatpush1.msra.mxu0 0.0
        %774 = vmatprep.mubr.f32.mxu0 0.0
        %775 = vmatmul.mubr.f32.gmra.mrb[0].mxu0 %v687
        %v776 = vpop.f32.mrb[0].mxu0
        %v777 = vadd.f32 0.0, %v776
        %v778 = vpop.f32.mrb[0].mxu0
        %779 = vmatprep.mubr.f32.mxu0 0.0
        %780 = vmatmul.mubr.f32.gmra.mrb[0].mxu0 %v690
        %v781 = vpop.f32.mrb[0].mxu0
        %v782 = vadd.f32 0.0, %v781
        %v783 = vpop.f32.mrb[0].mxu0
        %784 = vmatprep.mubr.f32.mxu0 0.0
        %785 = vmatmul.mubr.f32.gmra.mrb[0].mxu0 %v693
        %v786 = vpop.f32.mrb[0].mxu0
        %v787 = vadd.f32 0.0, %v786
        %v788 = vpop.f32.mrb[0].mxu0
        %789 = vmatprep.mubr.f32.mxu0 0.0
        %790 = vmatmul.mubr.f32.gmra.mrb[0].mxu0 %v696
        %v791 = vpop.f32.mrb[0].mxu0
        %v792 = vadd.f32 0.0, %v791
        %v793 = vpop.f32.mrb[0].mxu0
        %794 = vmatprep.mubr.f32.mxu0 0.0
        %795 = vmatmul.mubr.f32.gmra.mrb[0].mxu0 %v699
        %v796 = vpop.f32.mrb[0].mxu0
        %v797 = vadd.f32 0.0, %v796
        %v798 = vpop.f32.mrb[0].mxu0
        %799 = vmatprep.mubr.f32.mxu0 0.0
        %800 = vmatmul.mubr.f32.gmra.mrb[0].mxu0 %v702
        %v801 = vpop.f32.mrb[0].mxu0
        %v802 = vadd.f32 0.0, %v801
        %v803 = vpop.f32.mrb[0].mxu0
        %804 = vmatprep.mubr.f32.mxu0 0.0
        %805 = vmatmul.mubr.f32.gmra.mrb[0].mxu0 %v705
        %v806 = vpop.f32.mrb[0].mxu0
        %v807 = vadd.f32 0.0, %v806
        %v808 = vpop.f32.mrb[0].mxu0
        %809 = vmatprep.mubr.f32.mxu0 0.0
        %810 = vmatmul.mubr.f32.gmra.mrb[0].mxu0 %v708
        %v811 = vpop.f32.mrb[0].mxu0
        %v812 = vadd.f32 0.0, %v811
        %v813 = vpop.f32.mrb[0].mxu0
        %814 = vdwg.mxu0
        %v815 = vadd.f32 %v777, %v782
        %v816 = vadd.f32 %v815, %v787
        %v817 = vadd.f32 %v816, %v792
        %v818 = vadd.f32 %v817, %v797
        %v819 = vadd.f32 %v818, %v802
        %v820 = vadd.f32 %v819, %v807
        %v821 = vadd.f32 %v820, %v812
        %v822 = vrot.slane %v821, 4
        %v823 = vadd.f32 %v821, %v822
        %v824 = vrot.slane %v823, 2
        %v825 = vadd.f32 %v823, %v824
        %v826 = vrot.slane %v825, 1
        %v827 = vadd.f32 %v825, %v826
        %v828 = vadd.f32 %v654, %v827
        %v829 = vmul.f32 %v777, %v777
        %v830 = vmul.f32 %v782, %v782
        %v831 = vmul.f32 %v787, %v787
        %v832 = vmul.f32 %v792, %v792
        %v833 = vmul.f32 %v797, %v797
        %v834 = vmul.f32 %v802, %v802
        %v835 = vmul.f32 %v807, %v807
        %v836 = vmul.f32 %v812, %v812
        %v837 = vadd.f32 %v829, %v830
        %v838 = vadd.f32 %v837, %v831
        %v839 = vadd.f32 %v838, %v832
        %v840 = vadd.f32 %v839, %v833
        %v841 = vadd.f32 %v840, %v834
        %v842 = vadd.f32 %v841, %v835
        %v843 = vadd.f32 %v842, %v836
        %v844 = vrot.slane %v843, 4
        %v845 = vadd.f32 %v843, %v844
        %v846 = vrot.slane %v845, 2
        %v847 = vadd.f32 %v845, %v846
        %v848 = vrot.slane %v847, 1
        %v849 = vadd.f32 %v847, %v848
        %v850 = vadd.f32 %v676, %v849
        %s851 = scalar_lea.vmem %s297, 192 [#allocation2]
        %v852 = vld [vmem:[%s851] sm:$0xff]
        %v853 = vld [vmem:[%s851 + $0x8] sm:$0xff]
        %v854 = vld [vmem:[%s851 + $0x10] sm:$0xff]
        %v855 = vld [vmem:[%s851 + $0x18] sm:$0xff]
        %v856 = vld [vmem:[%s851 + $0x20] sm:$0xff]
        %v857 = vld [vmem:[%s851 + $0x28] sm:$0xff]
        %v858 = vld [vmem:[%s851 + $0x30] sm:$0xff]
        %v859 = vld [vmem:[%s851 + $0x38] sm:$0xff]
        %v861 = vsel %vm333, %v852, 0
        %v864 = vsel %vm333, %v853, 0
        %v867 = vsel %vm333, %v854, 0
        %v870 = vsel %vm333, %v855, 0
        %v873 = vsel %vm333, %v856, 0
        %v876 = vsel %vm333, %v857, 0
        %v879 = vsel %vm333, %v858, 0
        %v882 = vsel %vm333, %v859, 0
        %884 = vmatprep.subr.mxu0 0.0
        %885 = vmatpush1.msra.mxu0 %v320
        %886 = vmatprep.subr.mxu0 0.0
        %887 = vmatpush1.msra.mxu0 %v321
        %888 = vmatprep.subr.mxu0 0.0
        %889 = vmatpush1.msra.mxu0 %v322
        %890 = vmatprep.subr.mxu0 0.0
        %891 = vmatpush1.msra.mxu0 %v323
        %892 = vmatprep.subr.mxu0 0.0
        %893 = vmatpush1.msra.mxu0 %v360
        %894 = vmatprep.subr.mxu0 0.0
        %895 = vmatpush1.msra.mxu0 0.0
        %896 = vmatprep.subr.mxu0 0.0
        %897 = vmatpush1.msra.mxu0 0.0
        %898 = vmatprep.subr.mxu0 0.0
        %899 = vmatpush1.msra.mxu0 0.0
        %900 = vmatprep.subr.mxu0 0.0
        %901 = vmatpush1.msra.mxu0 0.0
        %902 = vmatprep.subr.mxu0 0.0
        %903 = vmatpush1.msra.mxu0 0.0
        %904 = vmatprep.subr.mxu0 0.0
        %905 = vmatpush1.msra.mxu0 0.0
        %906 = vmatprep.subr.mxu0 0.0
        %907 = vmatpush1.msra.mxu0 0.0
        %908 = vmatprep.subr.mxu0 0.0
        %909 = vmatpush1.msra.mxu0 0.0
        %910 = vmatprep.subr.mxu0 0.0
        %911 = vmatpush1.msra.mxu0 0.0
        %912 = vmatprep.subr.mxu0 0.0
        %913 = vmatpush1.msra.mxu0 0.0
        %914 = vmatprep.subr.mxu0 0.0
        %915 = vmatpush1.msra.mxu0 0.0
        %916 = vmatprep.subr.mxu0 0.0
        %917 = vmatpush1.msra.mxu0 0.0
        %918 = vmatprep.subr.mxu0 0.0
        %919 = vmatpush1.msra.mxu0 0.0
        %920 = vmatprep.subr.mxu0 0.0
        %921 = vmatpush1.msra.mxu0 0.0
        %922 = vmatprep.subr.mxu0 0.0
        %923 = vmatpush1.msra.mxu0 0.0
        %924 = vmatprep.subr.mxu0 0.0
        %925 = vmatpush1.msra.mxu0 0.0
        %926 = vmatprep.subr.mxu0 0.0
        %927 = vmatpush1.msra.mxu0 0.0
        %928 = vmatprep.subr.mxu0 0.0
        %929 = vmatpush1.msra.mxu0 0.0
        %930 = vmatprep.subr.mxu0 0.0
        %931 = vmatpush1.msra.mxu0 0.0
        %932 = vmatprep.subr.mxu0 0.0
        %933 = vmatpush1.msra.mxu0 0.0
        %934 = vmatprep.subr.mxu0 0.0
        %935 = vmatpush1.msra.mxu0 0.0
        %936 = vmatprep.subr.mxu0 0.0
        %937 = vmatpush1.msra.mxu0 0.0
        %938 = vmatprep.subr.mxu0 0.0
        %939 = vmatpush1.msra.mxu0 0.0
        %940 = vmatprep.subr.mxu0 0.0
        %941 = vmatpush1.msra.mxu0 0.0
        %942 = vmatprep.subr.mxu0 0.0
        %943 = vmatpush1.msra.mxu0 0.0
        %944 = vmatprep.subr.mxu0 0.0
        %945 = vmatpush1.msra.mxu0 0.0
        %946 = vmatprep.subr.mxu0 0.0
        %947 = vmatpush1.msra.mxu0 0.0
        %948 = vmatprep.mubr.f32.mxu0 0.0
        %949 = vmatmul.mubr.f32.gmra.mrb[0].mxu0 %v861
        %v950 = vpop.f32.mrb[0].mxu0
        %v951 = vadd.f32 0.0, %v950
        %v952 = vpop.f32.mrb[0].mxu0
        %953 = vmatprep.mubr.f32.mxu0 0.0
        %954 = vmatmul.mubr.f32.gmra.mrb[0].mxu0 %v864
        %v955 = vpop.f32.mrb[0].mxu0
        %v956 = vadd.f32 0.0, %v955
        %v957 = vpop.f32.mrb[0].mxu0
        %958 = vmatprep.mubr.f32.mxu0 0.0
        %959 = vmatmul.mubr.f32.gmra.mrb[0].mxu0 %v867
        %v960 = vpop.f32.mrb[0].mxu0
        %v961 = vadd.f32 0.0, %v960
        %v962 = vpop.f32.mrb[0].mxu0
        %963 = vmatprep.mubr.f32.mxu0 0.0
        %964 = vmatmul.mubr.f32.gmra.mrb[0].mxu0 %v870
        %v965 = vpop.f32.mrb[0].mxu0
        %v966 = vadd.f32 0.0, %v965
        %v967 = vpop.f32.mrb[0].mxu0
        %968 = vmatprep.mubr.f32.mxu0 0.0
        %969 = vmatmul.mubr.f32.gmra.mrb[0].mxu0 %v873
        %v970 = vpop.f32.mrb[0].mxu0
        %v971 = vadd.f32 0.0, %v970
        %v972 = vpop.f32.mrb[0].mxu0
        %973 = vmatprep.mubr.f32.mxu0 0.0
        %974 = vmatmul.mubr.f32.gmra.mrb[0].mxu0 %v876
        %v975 = vpop.f32.mrb[0].mxu0
        %v976 = vadd.f32 0.0, %v975
        %v977 = vpop.f32.mrb[0].mxu0
        %978 = vmatprep.mubr.f32.mxu0 0.0
        %979 = vmatmul.mubr.f32.gmra.mrb[0].mxu0 %v879
        %v980 = vpop.f32.mrb[0].mxu0
        %v981 = vadd.f32 0.0, %v980
        %v982 = vpop.f32.mrb[0].mxu0
        %983 = vmatprep.mubr.f32.mxu0 0.0
        %984 = vmatmul.mubr.f32.gmra.mrb[0].mxu0 %v882
        %v985 = vpop.f32.mrb[0].mxu0
        %v986 = vadd.f32 0.0, %v985
        %v987 = vpop.f32.mrb[0].mxu0
        %988 = vdwg.mxu0
        %v989 = vadd.f32 %v951, %v956
        %v990 = vadd.f32 %v989, %v961
        %v991 = vadd.f32 %v990, %v966
        %v992 = vadd.f32 %v991, %v971
        %v993 = vadd.f32 %v992, %v976
        %v994 = vadd.f32 %v993, %v981
        %v995 = vadd.f32 %v994, %v986
        %v996 = vrot.slane %v995, 4
        %v997 = vadd.f32 %v995, %v996
        %v998 = vrot.slane %v997, 2
        %v999 = vadd.f32 %v997, %v998
        %v1000 = vrot.slane %v999, 1
        %v1001 = vadd.f32 %v999, %v1000
        %v1002 = vadd.f32 %v828, %v1001
        %v1003 = vmul.f32 %v951, %v951
        %v1004 = vmul.f32 %v956, %v956
        %v1005 = vmul.f32 %v961, %v961
        %v1006 = vmul.f32 %v966, %v966
        %v1007 = vmul.f32 %v971, %v971
        %v1008 = vmul.f32 %v976, %v976
        %v1009 = vmul.f32 %v981, %v981
        %v1010 = vmul.f32 %v986, %v986
        %v1011 = vadd.f32 %v1003, %v1004
        %v1012 = vadd.f32 %v1011, %v1005
        %v1013 = vadd.f32 %v1012, %v1006
        %v1014 = vadd.f32 %v1013, %v1007
        %v1015 = vadd.f32 %v1014, %v1008
        %v1016 = vadd.f32 %v1015, %v1009
        %v1017 = vadd.f32 %v1016, %v1010
        %v1018 = vrot.slane %v1017, 4
        %v1019 = vadd.f32 %v1017, %v1018
        %v1020 = vrot.slane %v1019, 2
        %v1021 = vadd.f32 %v1019, %v1020
        %v1022 = vrot.slane %v1021, 1
        %v1023 = vadd.f32 %v1021, %v1022
        %v1024 = vadd.f32 %v850, %v1023
        %v1025 = vld [vmem:[%s2] sm:$0x1]
        %v1026 = vadd.f32 %v1025, %v1002
        %1027 = vst [vmem:[%s2] sm:$0x1] %v1026
        %v1028 = vld [vmem:[%s3] sm:$0x1]
        %v1029 = vadd.f32 %v1028, %v1024
        %1030 = vst [vmem:[%s3] sm:$0x1] %v1029
        // Predicated region
        $region71: #{patch_conv_layer.2} parent=61 // pred_check
          %p1031 = pneg %p75
        $region72: #{patch_conv_layer.2} parent=61 // pred_check_branch
          %1033 = sbr.rel (%p1031) target = $region74
        $region73: #{patch_conv_layer.2} parent=61 // pred_region
          _
        $region74: #{patch_conv_layer.2} parent=61 // pred_fallthru
          _
        // Predicated region
        $region75: #{patch_conv_layer.2} parent=61 // pred_check
          %p1034 = pneg %p96
        $region76: #{patch_conv_layer.2} parent=61 // pred_check_branch
          %1036 = sbr.rel (%p1034) target = $region78
        $region77: #{patch_conv_layer.2} parent=61 // pred_region
          _
        $region78: #{patch_conv_layer.2} parent=61 // pred_fallthru
          _
        // Predicated region
        $region79: #{patch_conv_layer.2} parent=61 // pred_check
          %p1037 = pneg %p75
        $region80: #{patch_conv_layer.2} parent=61 // pred_check_branch
          %1039 = sbr.rel (%p1037) target = $region82
        $region81: #{patch_conv_layer.2} parent=61 // pred_region
          _
        $region82: #{patch_conv_layer.2} parent=61 // pred_fallthru
          _
        // Predicated region
        $region83: #{patch_conv_layer.2} parent=61 // pred_check
          %p1040 = pneg %p96
        $region84: #{patch_conv_layer.2} parent=61 // pred_check_branch
          %1042 = sbr.rel (%p1040) target = $region86
        $region85: #{patch_conv_layer.2} parent=61 // pred_region
          _
        $region86: #{patch_conv_layer.2} parent=61 // pred_fallthru
          _
      $region62: #{patch_conv_layer.2} parent=5 // pred_fallthru
        _
      %p1043 = scmp.le.s32.totalorder 2, %s10
      // Predicated region
      $region87: #{patch_conv_layer.2} parent=5 // pred_check
        %p1044 = pneg %p1043
      $region88: #{patch_conv_layer.2} parent=5 // pred_check_branch
        %1046 = sbr.rel (%p1044) target = $region90
      $region89: #{patch_conv_layer.2} parent=5 // pred_region
        %s1047 = ssub.s32 %s10, 2
      $region90: #{patch_conv_layer.2} parent=5 // pred_fallthru
        _
    $region6: #{patch_conv_layer.2} parent=1 // loop_footer
      %s14 = sadd.s32 1, %s10
    $region7: #{patch_conv_layer.2} parent=1 // loop_footer_branch
      %9 = sbr.rel target = $region3
    $region8: #{patch_conv_layer.2} parent=1 // loop_exit
      _

</llo_original>
